<compile_context>
chip_gen: v7x
topology: tpu7x:2x2x1
jax: 0.10.0
libtpu: 0.0.40
codegen_flags: <defaults>
</compile_context>

<pallas_src>
import functools

import jax
import jax.numpy as jnp
import numpy as np
from jax import lax
from jax.experimental import pallas as pl
from jax.experimental.pallas import tpu as pltpu


def _round_up(x, m):
    return (x + m - 1) // m * m


def _ceil_div(a, b):
    return -(-a // b)


def _pick_tile(m, itemsize, rows, budget_bytes=2 << 20, max_tile=16384):
    """Pick a lane tile (multiple of 128) + padded extent for a length-m axis."""
    cap = min(max_tile, max(512, (budget_bytes // (rows * itemsize)) // 128 * 128))
    steps = 1 if m <= 256 else max(2, _ceil_div(m, cap))   # >=2 steps for v7x dual-TC
    tile = _round_up(_ceil_div(m, steps), 128)
    return tile, tile * steps, steps


# ---------------------------------------------------------------------------
# Pallas kernels
# ---------------------------------------------------------------------------
def _conv_pool_kernel(x_ref, w_ref, b_ref, o_ref, *, n_phases, out_c):
    """Fused conv + bias + ReLU + 2x2 max-pool as ONE MXU matmul per tile.

    x_ref: (K, TM)           bf16  combined-window im2col, pooled pixels on lanes
    w_ref: (n_phases*out_c,K) bf16  conv weights scattered into the combined window
    b_ref: (out_c, 1)         f32
    o_ref: (out_c, TM)        bf16  pooled + ReLU'd output, pixels lane-dense
    """
    acc = jnp.dot(w_ref[...], x_ref[...], preferred_element_type=jnp.float32)
    r = acc[0:out_c]
    for p in range(1, n_phases):                 # fused max-pool over the 4 phases
        r = jnp.maximum(r, acc[p * out_c:(p + 1) * out_c])
    # relu(max_p(conv_p) + b) == maxpool(relu(conv + b))  (bias identical per phase)
    o_ref[...] = jnp.maximum(r + b_ref[...], 0.0).astype(o_ref.dtype)


def _fc_head_kernel(x_ref, w1_ref, b1_ref, w2_ref, b2_ref, w3_ref, b3_ref, o_ref):
    """Fused fc1+ReLU -> fc2+ReLU -> fc3.  All weights VMEM-resident, bf16 MXU.

    x_ref:  (16, TB, 25) bf16   conv2 output in native (C, batch, HW) layout
    w1_ref: (16, 25, 128) bf16  fc1 weight with the flatten permutation folded in
    w2/w3:  (128, 128) bf16;  b*: (1, 128) f32;  o_ref: (TB, 128) f32
    """
    c2 = x_ref.shape[0]
    h = jnp.dot(x_ref[0], w1_ref[0], preferred_element_type=jnp.float32)
    for c in range(1, c2):
        h += jnp.dot(x_ref[c], w1_ref[c], preferred_element_type=jnp.float32)
    h = jnp.maximum(h + b1_ref[...], 0.0).astype(jnp.bfloat16)
    h = jnp.dot(h, w2_ref[...], preferred_element_type=jnp.float32) + b2_ref[...]
    h = jnp.maximum(h, 0.0).astype(jnp.bfloat16)
    o_ref[...] = jnp.dot(h, w3_ref[...], preferred_element_type=jnp.float32) + b3_ref[...]


# ---------------------------------------------------------------------------
# Kernel wrappers
# ---------------------------------------------------------------------------
def conv_pool(patches, w_big, b_col, out_c, out_dtype=jnp.bfloat16):
    """patches (K, M) bf16, w_big (4*out_c, K) bf16, b (out_c,1) -> (out_c, Mp)."""
    kp, m = patches.shape
    n_phases = w_big.shape[0] // out_c
    tm, mp, steps = _pick_tile(m, patches.dtype.itemsize, kp)
    if mp != m:
        patches = jnp.pad(patches, ((0, 0), (0, mp - m)))
    kernel = functools.partial(_conv_pool_kernel, n_phases=n_phases, out_c=out_c)
    cost = pl.CostEstimate(
        flops=2 * n_phases * out_c * kp * mp,
        transcendentals=0,
        bytes_accessed=kp * mp * 2 + out_c * mp * 2 + n_phases * out_c * kp * 2 + out_c * 4,
    )
    return pl.pallas_call(
        kernel,
        out_shape=jax.ShapeDtypeStruct((out_c, mp), out_dtype),
        grid=(steps,),
        in_specs=[
            pl.BlockSpec((kp, tm), lambda i: (0, i)),
            pl.BlockSpec((n_phases * out_c, kp), lambda i: (0, 0)),  # resident weights
            pl.BlockSpec((out_c, 1), lambda i: (0, 0)),              # resident bias
        ],
        out_specs=pl.BlockSpec((out_c, tm), lambda i: (0, i)),
        compiler_params=pltpu.CompilerParams(dimension_semantics=("parallel",)),
        cost_estimate=cost,
    )(patches, w_big, b_col)


def fc_head(x_cnk, w1, b1, w2, b2, w3, b3):
    """x_cnk: (16, N, 25) bf16 -> logits (N, 10) f32.  One fused call over batch tiles."""
    c2, n, hw = x_cnk.shape
    steps = 1 if n <= 16 else max(2, _ceil_div(n, 256))
    tb = _round_up(_ceil_div(n, steps), 8)
    np_ = tb * steps
    if np_ != n:
        x_cnk = jnp.pad(x_cnk, ((0, 0), (0, np_ - n), (0, 0)))
    cost = pl.CostEstimate(
        flops=2 * np_ * (c2 * hw * 128 + 128 * 128 + 128 * 128),
        transcendentals=0,
        bytes_accessed=np_ * c2 * hw * 2 + np_ * 128 * 4
        + (c2 * hw * 128 + 2 * 128 * 128) * 2 + 3 * 128 * 4,
    )
    out = pl.pallas_call(
        _fc_head_kernel,
        out_shape=jax.ShapeDtypeStruct((np_, 128), jnp.float32),
        grid=(steps,),
        in_specs=[
            pl.BlockSpec((c2, tb, hw), lambda i: (0, i, 0)),
            pl.BlockSpec((c2, hw, 128), lambda i: (0, 0, 0)),
            pl.BlockSpec((1, 128), lambda i: (0, 0)),
            pl.BlockSpec((128, 128), lambda i: (0, 0)),
            pl.BlockSpec((1, 128), lambda i: (0, 0)),
            pl.BlockSpec((128, 128), lambda i: (0, 0)),
            pl.BlockSpec((1, 128), lambda i: (0, 0)),
        ],
        out_specs=pl.BlockSpec((tb, 128), lambda i: (i, 0)),
        compiler_params=pltpu.CompilerParams(dimension_semantics=("parallel",)),
        cost_estimate=cost,
    )(x_cnk, w1, b1, w2, b2, w3, b3)
    return out[:n, :10]


# ---------------------------------------------------------------------------
# Parameters (PyTorch layout) + one-time kernel-ready preparation
# ---------------------------------------------------------------------------
def init_params(key):
    ks = jax.random.split(key, 10)

    def uni(k, shape, fan_in):
        bound = 1.0 / jnp.sqrt(jnp.float32(fan_in))
        return jax.random.uniform(k, shape, jnp.float32, -bound, bound)

    return {
        "conv1_w": uni(ks[0], (6, 1, 3, 3), 9),
        "conv1_b": uni(ks[1], (6,), 9),
        "conv2_w": uni(ks[2], (16, 6, 5, 5), 150),
        "conv2_b": uni(ks[3], (16,), 150),
        "fc1_w": uni(ks[4], (120, 400), 400),
        "fc1_b": uni(ks[5], (120,), 400),
        "fc2_w": uni(ks[6], (84, 120), 120),
        "fc2_b": uni(ks[7], (84,), 120),
        "fc3_w": uni(ks[8], (10, 84), 84),
        "fc3_b": uni(ks[9], (10,), 84),
    }


def prepare_params(p):
    """One-time repack of PyTorch-layout weights into kernel-ready layouts (bf16)."""
    bf16, f32 = jnp.bfloat16, jnp.float32

    # conv1: scatter the 3x3 kernel into the 4x4 combined (pool-phase x tap)
    # window; one row-group of 6 output channels per pool phase (py, px).
    c1 = np.asarray(p["conv1_w"], np.float32)                 # (6,1,3,3)
    w1big = np.zeros((4, 6, 4, 4), np.float32)
    for py in range(2):
        for px in range(2):
            w1big[py * 2 + px, :, py:py + 3, px:px + 3] = c1[:, 0]
    w1big = w1big.reshape(24, 16)

    # conv2: scatter the (6,5,5) kernel into the 6x6 combined window; K order
    # matches conv_general_dilated_patches' (c, r, s) channel ordering.
    c2 = np.asarray(p["conv2_w"], np.float32)                 # (16,6,5,5)
    w2big = np.zeros((4, 16, 6, 6, 6), np.float32)
    for py in range(2):
        for px in range(2):
            w2big[py * 2 + px, :, :, py:py + 5, px:px + 5] = c2
    w2big = w2big.reshape(64, 216)

    # fc1: fold the PyTorch flatten order (c, h, w) into the weight so conv2's
    # output can be consumed in its native (C, N, HW) layout (no XLA transpose).
    f1 = np.asarray(p["fc1_w"], np.float32)                   # (120, 400)
    w1p = f1.reshape(120, 16, 25).transpose(1, 2, 0)          # (16, 25, 120)
    w1p = np.pad(w1p, ((0, 0), (0, 0), (0, 8)))               # (16, 25, 128)

    def pad2(a, shape):
        return np.pad(a, ((0, shape[0] - a.shape[0]), (0, shape[1] - a.shape[1])))

    f2 = pad2(np.asarray(p["fc2_w"], np.float32).T, (128, 128))
    f3 = pad2(np.asarray(p["fc3_w"], np.float32).T, (128, 128))
    b1 = pad2(np.asarray(p["fc1_b"], np.float32).reshape(1, -1), (1, 128))
    b2 = pad2(np.asarray(p["fc2_b"], np.float32).reshape(1, -1), (1, 128))
    b3 = pad2(np.asarray(p["fc3_b"], np.float32).reshape(1, -1), (1, 128))

    return {
        "c1w": jnp.asarray(w1big, bf16),
        "c1b": jnp.asarray(np.asarray(p["conv1_b"], np.float32).reshape(6, 1), f32),
        "c2w": jnp.asarray(w2big, bf16),
        "c2b": jnp.asarray(np.asarray(p["conv2_b"], np.float32).reshape(16, 1), f32),
        "f1w": jnp.asarray(w1p, bf16),
        "f1b": jnp.asarray(b1, f32),
        "f2w": jnp.asarray(f2, bf16),
        "f2b": jnp.asarray(b2, f32),
        "f3w": jnp.asarray(f3, bf16),
        "f3b": jnp.asarray(b3, f32),
    }


# ---------------------------------------------------------------------------
# Forward pass
# ---------------------------------------------------------------------------
@jax.jit
def forward(prep, x_nchw):
    n = x_nchw.shape[0]
    x = x_nchw.astype(jnp.bfloat16)   # bf16 BEFORE the im2col blow-up

    # conv1(3x3, pad=1) + ReLU + 2x2 max-pool.
    # ONE fused gather: 4x4 window (3x3 taps x 2x2 pool phases), stride 2.
    p1 = lax.conv_general_dilated_patches(
        x, (4, 4), (2, 2), ((1, 1), (1, 1)),
        dimension_numbers=("NCHW", "OIHW", "CNHW"))          # (16, N, 14, 14)
    p1 = p1.reshape(16, n * 196)
    a1 = conv_pool(p1, prep["c1w"], prep["c1b"], out_c=6)[:, :n * 196]
    a1 = a1.reshape(6, n, 14, 14)                             # bf16, CNHW

    # conv2(5x5, valid) + ReLU + 2x2 max-pool.
    # ONE fused gather: 6x6 window (5x5 taps x 2x2 pool phases), stride 2.
    p2 = lax.conv_general_dilated_patches(
        a1, (6, 6), (2, 2), "VALID",
        dimension_numbers=("CNHW", "OIHW", "CNHW"))           # (216, N, 5, 5)
    p2 = p2.reshape(216, n * 25)
    a2 = conv_pool(p2, prep["c2w"], prep["c2b"], out_c=16)[:, :n * 25]
    a2 = a2.reshape(16, n, 25)                                # bf16; flatten perm in f1w

    # fused fc1+ReLU -> fc2+ReLU -> fc3
    return fc_head(a2, prep["f1w"], prep["f1b"], prep["f2w"], prep["f2b"],
                   prep["f3w"], prep["f3b"])


# ---------------------------------------------------------------------------
# Pure-JAX reference (f32) for a numerical sanity check
# ---------------------------------------------------------------------------
def reference_forward(params, x):
    dn = ("NCHW", "OIHW", "NCHW")
    y = lax.conv_general_dilated(x, params["conv1_w"], (1, 1), ((1, 1), (1, 1)),
                                 dimension_numbers=dn)
    y = jax.nn.relu(y + params["conv1_b"].reshape(1, -1, 1, 1))
    y = lax.reduce_window(y, -jnp.inf, lax.max, (1, 1, 2, 2), (1, 1, 2, 2), "VALID")
    y = lax.conv_general_dilated(y, params["conv2_w"], (1, 1), "VALID",
                                 dimension_numbers=dn)
    y = jax.nn.relu(y + params["conv2_b"].reshape(1, -1, 1, 1))
    y = lax.reduce_window(y, -jnp.inf, lax.max, (1, 1, 2, 2), (1, 1, 2, 2), "VALID")
    v = y.reshape(y.shape[0], -1)
    h = jax.nn.relu(v @ params["fc1_w"].T + params["fc1_b"])
    h = jax.nn.relu(h @ params["fc2_w"].T + params["fc2_b"])
    return h @ params["fc3_w"].T + params["fc3_b"]


if __name__ == "__main__":
    key = jax.random.PRNGKey(0)
    pkey, xkey = jax.random.split(key)
    params = init_params(pkey)
    prep = prepare_params(params)

    # MNIST-shaped input (28x28 is required by fc1's 400 = 16*5*5 fan-in).
    x = jax.random.normal(xkey, (2, 1, 28, 28), dtype=jnp.float32)

    logits = jax.block_until_ready(forward(prep, x))
    assert logits.shape == (2, 10), logits.shape
    assert bool(jnp.all(jnp.isfinite(logits)))

    ref = reference_forward(params, x)
    err = float(jnp.max(jnp.abs(logits - ref)))
    assert err < 5e-2, f"mismatch vs reference: max abs err {err}"

    print("KERNEL_OK")
</pallas_src>

<mosaic_0001>
module attributes {stable_mosaic.version = 11 : i64} {
  func.func @_conv_pool_kernel(%arg0: i32, %arg1: memref<16x256xbf16, #tpu.memory_space<vmem>>, %arg2: memref<24x16xbf16, #tpu.memory_space<vmem>>, %arg3: memref<6x1xf32, #tpu.memory_space<vmem>>, %arg4: memref<6x256xbf16, #tpu.memory_space<vmem>>) attributes {dimension_semantics = [#tpu.dimension_semantics<parallel>], iteration_bounds = array<i64: 2>, scalar_prefetch = 0 : i64, scratch_operands = 0 : i64, tpu.core_type = #tpu.core_type<tc>, window_params = [{transform_indices = @transform_0, window_bounds = array<i64: 16, 256>}, {pipeline_mode = #tpu.pipeline_mode<synchronous>, transform_indices = @transform_1, window_bounds = array<i64: 24, 16>}, {pipeline_mode = #tpu.pipeline_mode<synchronous>, transform_indices = @transform_2, window_bounds = array<i64: 6, 1>}, {transform_indices = @transform_3, window_bounds = array<i64: 6, 256>}]} {
    %c0 = arith.constant 0 : index
    %c0_0 = arith.constant 0 : index
    %0 = vector.load %arg2[%c0, %c0_0] : memref<24x16xbf16, #tpu.memory_space<vmem>>, vector<24x16xbf16>
    %c0_1 = arith.constant 0 : index
    %c0_2 = arith.constant 0 : index
    %1 = vector.load %arg1[%c0_1, %c0_2] : memref<16x256xbf16, #tpu.memory_space<vmem>>, vector<16x256xbf16>
    %cst = arith.constant dense<0.000000e+00> : vector<24x256xf32>
    %2 = tpu.matmul %0, %1, %cst {dimension_numbers = #tpu.dot_dimension_numbers<[1], [0], [0], [1], [0, 0, 1, 1], [], []>} : vector<24x16xbf16>, vector<16x256xbf16>, vector<24x256xf32> -> vector<24x256xf32>
    %3 = vector.extract_strided_slice %2 {offsets = [0, 0], sizes = [6, 256], strides = [1, 1]} : vector<24x256xf32> to vector<6x256xf32>
    %4 = vector.extract_strided_slice %2 {offsets = [6, 0], sizes = [6, 256], strides = [1, 1]} : vector<24x256xf32> to vector<6x256xf32>
    %5 = arith.maximumf %3, %4 : vector<6x256xf32>
    %6 = vector.extract_strided_slice %2 {offsets = [12, 0], sizes = [6, 256], strides = [1, 1]} : vector<24x256xf32> to vector<6x256xf32>
    %7 = arith.maximumf %5, %6 : vector<6x256xf32>
    %8 = vector.extract_strided_slice %2 {offsets = [18, 0], sizes = [6, 256], strides = [1, 1]} : vector<24x256xf32> to vector<6x256xf32>
    %9 = arith.maximumf %7, %8 : vector<6x256xf32>
    %c0_3 = arith.constant 0 : index
    %c0_4 = arith.constant 0 : index
    %10 = vector.load %arg3[%c0_3, %c0_4] : memref<6x1xf32, #tpu.memory_space<vmem>>, vector<6x1xf32>
    %11 = vector.broadcast %10 : vector<6x1xf32> to vector<6x256xf32>
    %12 = arith.addf %9, %11 : vector<6x256xf32>
    %cst_5 = arith.constant 0.000000e+00 : f32
    %13 = vector.broadcast %cst_5 : f32 to vector<6x256xf32>
    %14 = arith.maximumf %12, %13 : vector<6x256xf32>
    %15 = arith.truncf %14 : vector<6x256xf32> to vector<6x256xbf16>
    %c0_6 = arith.constant 0 : index
    %c0_7 = arith.constant 0 : index
    %16 = vector.load %arg4[%c0_6, %c0_7] : memref<6x256xbf16, #tpu.memory_space<vmem>>, vector<6x256xbf16>
    tpu.vector_store %arg4[%c0_6, %c0_7], %15 {strides = array<i32>} : memref<6x256xbf16, #tpu.memory_space<vmem>>, vector<6x256xbf16>,
    return
  }
  func.func @transform_0(%arg0: i32) -> (i32, i32) {
    %c0_i32 = arith.constant 0 : i32
    %c0_i32_0 = arith.constant 0 : i32
    return %c0_i32, %arg0 : i32, i32
  }
  func.func @transform_1(%arg0: i32) -> (i32, i32) {
    %c0_i32 = arith.constant 0 : i32
    %c0_i32_0 = arith.constant 0 : i32
    %c0_i32_1 = arith.constant 0 : i32
    return %c0_i32, %c0_i32_0 : i32, i32
  }
  func.func @transform_2(%arg0: i32) -> (i32, i32) {
    %c0_i32 = arith.constant 0 : i32
    %c0_i32_0 = arith.constant 0 : i32
    %c0_i32_1 = arith.constant 0 : i32
    return %c0_i32, %c0_i32_0 : i32, i32
  }
  func.func @transform_3(%arg0: i32) -> (i32, i32) {
    %c0_i32 = arith.constant 0 : i32
    %c0_i32_0 = arith.constant 0 : i32
    return %c0_i32, %arg0 : i32, i32
  }
}

module attributes {stable_mosaic.version = 11 : i64} {
  func.func @_conv_pool_kernel(%arg0: i32, %arg1: memref<216x128xbf16, #tpu.memory_space<vmem>>, %arg2: memref<64x216xbf16, #tpu.memory_space<vmem>>, %arg3: memref<16x1xf32, #tpu.memory_space<vmem>>, %arg4: memref<16x128xbf16, #tpu.memory_space<vmem>>) attributes {dimension_semantics = [#tpu.dimension_semantics<parallel>], iteration_bounds = array<i64: 1>, scalar_prefetch = 0 : i64, scratch_operands = 0 : i64, tpu.core_type = #tpu.core_type<tc>, window_params = [{transform_indices = @transform_0, window_bounds = array<i64: 216, 128>}, {pipeline_mode = #tpu.pipeline_mode<synchronous>, transform_indices = @transform_1, window_bounds = array<i64: 64, 216>}, {pipeline_mode = #tpu.pipeline_mode<synchronous>, transform_indices = @transform_2, window_bounds = array<i64: 16, 1>}, {transform_indices = @transform_3, window_bounds = array<i64: 16, 128>}]} {
    %c0 = arith.constant 0 : index
    %c0_0 = arith.constant 0 : index
    %0 = vector.load %arg2[%c0, %c0_0] : memref<64x216xbf16, #tpu.memory_space<vmem>>, vector<64x216xbf16>
    %c0_1 = arith.constant 0 : index
    %c0_2 = arith.constant 0 : index
    %1 = vector.load %arg1[%c0_1, %c0_2] : memref<216x128xbf16, #tpu.memory_space<vmem>>, vector<216x128xbf16>
    %cst = arith.constant dense<0.000000e+00> : vector<64x128xf32>
    %2 = tpu.matmul %0, %1, %cst {dimension_numbers = #tpu.dot_dimension_numbers<[1], [0], [0], [1], [0, 0, 1, 1], [], []>} : vector<64x216xbf16>, vector<216x128xbf16>, vector<64x128xf32> -> vector<64x128xf32>
    %3 = vector.extract_strided_slice %2 {offsets = [0, 0], sizes = [16, 128], strides = [1, 1]} : vector<64x128xf32> to vector<16x128xf32>
    %4 = vector.extract_strided_slice %2 {offsets = [16, 0], sizes = [16, 128], strides = [1, 1]} : vector<64x128xf32> to vector<16x128xf32>
    %5 = arith.maximumf %3, %4 : vector<16x128xf32>
    %6 = vector.extract_strided_slice %2 {offsets = [32, 0], sizes = [16, 128], strides = [1, 1]} : vector<64x128xf32> to vector<16x128xf32>
    %7 = arith.maximumf %5, %6 : vector<16x128xf32>
    %8 = vector.extract_strided_slice %2 {offsets = [48, 0], sizes = [16, 128], strides = [1, 1]} : vector<64x128xf32> to vector<16x128xf32>
    %9 = arith.maximumf %7, %8 : vector<16x128xf32>
    %c0_3 = arith.constant 0 : index
    %c0_4 = arith.constant 0 : index
    %10 = vector.load %arg3[%c0_3, %c0_4] : memref<16x1xf32, #tpu.memory_space<vmem>>, vector<16x1xf32>
    %11 = vector.broadcast %10 : vector<16x1xf32> to vector<16x128xf32>
    %12 = arith.addf %9, %11 : vector<16x128xf32>
    %cst_5 = arith.constant 0.000000e+00 : f32
    %13 = vector.broadcast %cst_5 : f32 to vector<16x128xf32>
    %14 = arith.maximumf %12, %13 : vector<16x128xf32>
    %15 = arith.truncf %14 : vector<16x128xf32> to vector<16x128xbf16>
    %c0_6 = arith.constant 0 : index
    %c0_7 = arith.constant 0 : index
    %16 = vector.load %arg4[%c0_6, %c0_7] : memref<16x128xbf16, #tpu.memory_space<vmem>>, vector<16x128xbf16>
    tpu.vector_store %arg4[%c0_6, %c0_7], %15 {strides = array<i32>} : memref<16x128xbf16, #tpu.memory_space<vmem>>, vector<16x128xbf16>,
    return
  }
  func.func @transform_0(%arg0: i32) -> (i32, i32) {
    %c0_i32 = arith.constant 0 : i32
    %c0_i32_0 = arith.constant 0 : i32
    return %c0_i32, %arg0 : i32, i32
  }
  func.func @transform_1(%arg0: i32) -> (i32, i32) {
    %c0_i32 = arith.constant 0 : i32
    %c0_i32_0 = arith.constant 0 : i32
    %c0_i32_1 = arith.constant 0 : i32
    return %c0_i32, %c0_i32_0 : i32, i32
  }
  func.func @transform_2(%arg0: i32) -> (i32, i32) {
    %c0_i32 = arith.constant 0 : i32
    %c0_i32_0 = arith.constant 0 : i32
    %c0_i32_1 = arith.constant 0 : i32
    return %c0_i32, %c0_i32_0 : i32, i32
  }
  func.func @transform_3(%arg0: i32) -> (i32, i32) {
    %c0_i32 = arith.constant 0 : i32
    %c0_i32_0 = arith.constant 0 : i32
    return %c0_i32, %arg0 : i32, i32
  }
}

module attributes {stable_mosaic.version = 11 : i64} {
  func.func @_fc_head_kernel(%arg0: i32, %arg1: memref<16x8x25xbf16, #tpu.memory_space<vmem>>, %arg2: memref<16x25x128xbf16, #tpu.memory_space<vmem>>, %arg3: memref<1x128xf32, #tpu.memory_space<vmem>>, %arg4: memref<128x128xbf16, #tpu.memory_space<vmem>>, %arg5: memref<1x128xf32, #tpu.memory_space<vmem>>, %arg6: memref<128x128xbf16, #tpu.memory_space<vmem>>, %arg7: memref<1x128xf32, #tpu.memory_space<vmem>>, %arg8: memref<8x128xf32, #tpu.memory_space<vmem>>) attributes {dimension_semantics = [#tpu.dimension_semantics<parallel>], iteration_bounds = array<i64: 1>, scalar_prefetch = 0 : i64, scratch_operands = 0 : i64, tpu.core_type = #tpu.core_type<tc>, window_params = [{transform_indices = @transform_0, window_bounds = array<i64: 16, 8, 25>}, {pipeline_mode = #tpu.pipeline_mode<synchronous>, transform_indices = @transform_1, window_bounds = array<i64: 16, 25, 128>}, {pipeline_mode = #tpu.pipeline_mode<synchronous>, transform_indices = @transform_2, window_bounds = array<i64: 1, 128>}, {pipeline_mode = #tpu.pipeline_mode<synchronous>, transform_indices = @transform_3, window_bounds = array<i64: 128, 128>}, {pipeline_mode = #tpu.pipeline_mode<synchronous>, transform_indices = @transform_4, window_bounds = array<i64: 1, 128>}, {pipeline_mode = #tpu.pipeline_mode<synchronous>, transform_indices = @transform_5, window_bounds = array<i64: 128, 128>}, {pipeline_mode = #tpu.pipeline_mode<synchronous>, transform_indices = @transform_6, window_bounds = array<i64: 1, 128>}, {transform_indices = @transform_7, window_bounds = array<i64: 8, 128>}]} {
    %c0 = arith.constant 0 : index
    %c0_0 = arith.constant 0 : index
    %c0_1 = arith.constant 0 : index
    %0 = vector.load %arg1[%c0, %c0_0, %c0_1] : memref<16x8x25xbf16, #tpu.memory_space<vmem>>, vector<1x8x25xbf16>
    %1 = vector.shape_cast %0 : vector<1x8x25xbf16> to vector<8x25xbf16>
    %c0_2 = arith.constant 0 : index
    %c0_3 = arith.constant 0 : index
    %c0_4 = arith.constant 0 : index
    %2 = vector.load %arg2[%c0_2, %c0_3, %c0_4] : memref<16x25x128xbf16, #tpu.memory_space<vmem>>, vector<1x25x128xbf16>
    %3 = vector.shape_cast %2 : vector<1x25x128xbf16> to vector<25x128xbf16>
    %cst = arith.constant dense<0.000000e+00> : vector<8x128xf32>
    %4 = tpu.matmul %1, %3, %cst {dimension_numbers = #tpu.dot_dimension_numbers<[1], [0], [0], [1], [0, 0, 1, 1], [], []>} : vector<8x25xbf16>, vector<25x128xbf16>, vector<8x128xf32> -> vector<8x128xf32>
    %c1 = arith.constant 1 : index
    %c0_5 = arith.constant 0 : index
    %c0_6 = arith.constant 0 : index
    %5 = vector.load %arg1[%c1, %c0_5, %c0_6] : memref<16x8x25xbf16, #tpu.memory_space<vmem>>, vector<1x8x25xbf16>
    %6 = vector.shape_cast %5 : vector<1x8x25xbf16> to vector<8x25xbf16>
    %c1_7 = arith.constant 1 : index
    %c0_8 = arith.constant 0 : index
    %c0_9 = arith.constant 0 : index
    %7 = vector.load %arg2[%c1_7, %c0_8, %c0_9] : memref<16x25x128xbf16, #tpu.memory_space<vmem>>, vector<1x25x128xbf16>
    %8 = vector.shape_cast %7 : vector<1x25x128xbf16> to vector<25x128xbf16>
    %cst_10 = arith.constant dense<0.000000e+00> : vector<8x128xf32>
    %9 = tpu.matmul %6, %8, %cst_10 {dimension_numbers = #tpu.dot_dimension_numbers<[1], [0], [0], [1], [0, 0, 1, 1], [], []>} : vector<8x25xbf16>, vector<25x128xbf16>, vector<8x128xf32> -> vector<8x128xf32>
    %10 = arith.addf %4, %9 : vector<8x128xf32>
    %c2 = arith.constant 2 : index
    %c0_11 = arith.constant 0 : index
    %c0_12 = arith.constant 0 : index
    %11 = vector.load %arg1[%c2, %c0_11, %c0_12] : memref<16x8x25xbf16, #tpu.memory_space<vmem>>, vector<1x8x25xbf16>
    %12 = vector.shape_cast %11 : vector<1x8x25xbf16> to vector<8x25xbf16>
    %c2_13 = arith.constant 2 : index
    %c0_14 = arith.constant 0 : index
    %c0_15 = arith.constant 0 : index
    %13 = vector.load %arg2[%c2_13, %c0_14, %c0_15] : memref<16x25x128xbf16, #tpu.memory_space<vmem>>, vector<1x25x128xbf16>
    %14 = vector.shape_cast %13 : vector<1x25x128xbf16> to vector<25x128xbf16>
    %cst_16 = arith.constant dense<0.000000e+00> : vector<8x128xf32>
    %15 = tpu.matmul %12, %14, %cst_16 {dimension_numbers = #tpu.dot_dimension_numbers<[1], [0], [0], [1], [0, 0, 1, 1], [], []>} : vector<8x25xbf16>, vector<25x128xbf16>, vector<8x128xf32> -> vector<8x128xf32>
    %16 = arith.addf %10, %15 : vector<8x128xf32>
    %c3 = arith.constant 3 : index
    %c0_17 = arith.constant 0 : index
    %c0_18 = arith.constant 0 : index
    %17 = vector.load %arg1[%c3, %c0_17, %c0_18] : memref<16x8x25xbf16, #tpu.memory_space<vmem>>, vector<1x8x25xbf16>
    %18 = vector.shape_cast %17 : vector<1x8x25xbf16> to vector<8x25xbf16>
    %c3_19 = arith.constant 3 : index
    %c0_20 = arith.constant 0 : index
    %c0_21 = arith.constant 0 : index
    %19 = vector.load %arg2[%c3_19, %c0_20, %c0_21] : memref<16x25x128xbf16, #tpu.memory_space<vmem>>, vector<1x25x128xbf16>
    %20 = vector.shape_cast %19 : vector<1x25x128xbf16> to vector<25x128xbf16>
    %cst_22 = arith.constant dense<0.000000e+00> : vector<8x128xf32>
    %21 = tpu.matmul %18, %20, %cst_22 {dimension_numbers = #tpu.dot_dimension_numbers<[1], [0], [0], [1], [0, 0, 1, 1], [], []>} : vector<8x25xbf16>, vector<25x128xbf16>, vector<8x128xf32> -> vector<8x128xf32>
    %22 = arith.addf %16, %21 : vector<8x128xf32>
    %c4 = arith.constant 4 : index
    %c0_23 = arith.constant 0 : index
    %c0_24 = arith.constant 0 : index
    %23 = vector.load %arg1[%c4, %c0_23, %c0_24] : memref<16x8x25xbf16, #tpu.memory_space<vmem>>, vector<1x8x25xbf16>
    %24 = vector.shape_cast %23 : vector<1x8x25xbf16> to vector<8x25xbf16>
    %c4_25 = arith.constant 4 : index
    %c0_26 = arith.constant 0 : index
    %c0_27 = arith.constant 0 : index
    %25 = vector.load %arg2[%c4_25, %c0_26, %c0_27] : memref<16x25x128xbf16, #tpu.memory_space<vmem>>, vector<1x25x128xbf16>
    %26 = vector.shape_cast %25 : vector<1x25x128xbf16> to vector<25x128xbf16>
    %cst_28 = arith.constant dense<0.000000e+00> : vector<8x128xf32>
    %27 = tpu.matmul %24, %26, %cst_28 {dimension_numbers = #tpu.dot_dimension_numbers<[1], [0], [0], [1], [0, 0, 1, 1], [], []>} : vector<8x25xbf16>, vector<25x128xbf16>, vector<8x128xf32> -> vector<8x128xf32>
    %28 = arith.addf %22, %27 : vector<8x128xf32>
    %c5 = arith.constant 5 : index
    %c0_29 = arith.constant 0 : index
    %c0_30 = arith.constant 0 : index
    %29 = vector.load %arg1[%c5, %c0_29, %c0_30] : memref<16x8x25xbf16, #tpu.memory_space<vmem>>, vector<1x8x25xbf16>
    %30 = vector.shape_cast %29 : vector<1x8x25xbf16> to vector<8x25xbf16>
    %c5_31 = arith.constant 5 : index
    %c0_32 = arith.constant 0 : index
    %c0_33 = arith.constant 0 : index
    %31 = vector.load %arg2[%c5_31, %c0_32, %c0_33] : memref<16x25x128xbf16, #tpu.memory_space<vmem>>, vector<1x25x128xbf16>
    %32 = vector.shape_cast %31 : vector<1x25x128xbf16> to vector<25x128xbf16>
    %cst_34 = arith.constant dense<0.000000e+00> : vector<8x128xf32>
    %33 = tpu.matmul %30, %32, %cst_34 {dimension_numbers = #tpu.dot_dimension_numbers<[1], [0], [0], [1], [0, 0, 1, 1], [], []>} : vector<8x25xbf16>, vector<25x128xbf16>, vector<8x128xf32> -> vector<8x128xf32>
    %34 = arith.addf %28, %33 : vector<8x128xf32>
    %c6 = arith.constant 6 : index
    %c0_35 = arith.constant 0 : index
    %c0_36 = arith.constant 0 : index
    %35 = vector.load %arg1[%c6, %c0_35, %c0_36] : memref<16x8x25xbf16, #tpu.memory_space<vmem>>, vector<1x8x25xbf16>
    %36 = vector.shape_cast %35 : vector<1x8x25xbf16> to vector<8x25xbf16>
    %c6_37 = arith.constant 6 : index
    %c0_38 = arith.constant 0 : index
    %c0_39 = arith.constant 0 : index
    %37 = vector.load %arg2[%c6_37, %c0_38, %c0_39] : memref<16x25x128xbf16, #tpu.memory_space<vmem>>, vector<1x25x128xbf16>
    %38 = vector.shape_cast %37 : vector<1x25x128xbf16> to vector<25x128xbf16>
    %cst_40 = arith.constant dense<0.000000e+00> : vector<8x128xf32>
    %39 = tpu.matmul %36, %38, %cst_40 {dimension_numbers = #tpu.dot_dimension_numbers<[1], [0], [0], [1], [0, 0, 1, 1], [], []>} : vector<8x25xbf16>, vector<25x128xbf16>, vector<8x128xf32> -> vector<8x128xf32>
    %40 = arith.addf %34, %39 : vector<8x128xf32>
    %c7 = arith.constant 7 : index
    %c0_41 = arith.constant 0 : index
    %c0_42 = arith.constant 0 : index
    %41 = vector.load %arg1[%c7, %c0_41, %c0_42] : memref<16x8x25xbf16, #tpu.memory_space<vmem>>, vector<1x8x25xbf16>
    %42 = vector.shape_cast %41 : vector<1x8x25xbf16> to vector<8x25xbf16>
    %c7_43 = arith.constant 7 : index
    %c0_44 = arith.constant 0 : index
    %c0_45 = arith.constant 0 : index
    %43 = vector.load %arg2[%c7_43, %c0_44, %c0_45] : memref<16x25x128xbf16, #tpu.memory_space<vmem>>, vector<1x25x128xbf16>
    %44 = vector.shape_cast %43 : vector<1x25x128xbf16> to vector<25x128xbf16>
    %cst_46 = arith.constant dense<0.000000e+00> : vector<8x128xf32>
    %45 = tpu.matmul %42, %44, %cst_46 {dimension_numbers = #tpu.dot_dimension_numbers<[1], [0], [0], [1], [0, 0, 1, 1], [], []>} : vector<8x25xbf16>, vector<25x128xbf16>, vector<8x128xf32> -> vector<8x128xf32>
    %46 = arith.addf %40, %45 : vector<8x128xf32>
    %c8 = arith.constant 8 : index
    %c0_47 = arith.constant 0 : index
    %c0_48 = arith.constant 0 : index
    %47 = vector.load %arg1[%c8, %c0_47, %c0_48] : memref<16x8x25xbf16, #tpu.memory_space<vmem>>, vector<1x8x25xbf16>
    %48 = vector.shape_cast %47 : vector<1x8x25xbf16> to vector<8x25xbf16>
    %c8_49 = arith.constant 8 : index
    %c0_50 = arith.constant 0 : index
    %c0_51 = arith.constant 0 : index
    %49 = vector.load %arg2[%c8_49, %c0_50, %c0_51] : memref<16x25x128xbf16, #tpu.memory_space<vmem>>, vector<1x25x128xbf16>
    %50 = vector.shape_cast %49 : vector<1x25x128xbf16> to vector<25x128xbf16>
    %cst_52 = arith.constant dense<0.000000e+00> : vector<8x128xf32>
    %51 = tpu.matmul %48, %50, %cst_52 {dimension_numbers = #tpu.dot_dimension_numbers<[1], [0], [0], [1], [0, 0, 1, 1], [], []>} : vector<8x25xbf16>, vector<25x128xbf16>, vector<8x128xf32> -> vector<8x128xf32>
    %52 = arith.addf %46, %51 : vector<8x128xf32>
    %c9 = arith.constant 9 : index
    %c0_53 = arith.constant 0 : index
    %c0_54 = arith.constant 0 : index
    %53 = vector.load %arg1[%c9, %c0_53, %c0_54] : memref<16x8x25xbf16, #tpu.memory_space<vmem>>, vector<1x8x25xbf16>
    %54 = vector.shape_cast %53 : vector<1x8x25xbf16> to vector<8x25xbf16>
    %c9_55 = arith.constant 9 : index
    %c0_56 = arith.constant 0 : index
    %c0_57 = arith.constant 0 : index
    %55 = vector.load %arg2[%c9_55, %c0_56, %c0_57] : memref<16x25x128xbf16, #tpu.memory_space<vmem>>, vector<1x25x128xbf16>
    %56 = vector.shape_cast %55 : vector<1x25x128xbf16> to vector<25x128xbf16>
    %cst_58 = arith.constant dense<0.000000e+00> : vector<8x128xf32>
    %57 = tpu.matmul %54, %56, %cst_58 {dimension_numbers = #tpu.dot_dimension_numbers<[1], [0], [0], [1], [0, 0, 1, 1], [], []>} : vector<8x25xbf16>, vector<25x128xbf16>, vector<8x128xf32> -> vector<8x128xf32>
    %58 = arith.addf %52, %57 : vector<8x128xf32>
    %c10 = arith.constant 10 : index
    %c0_59 = arith.constant 0 : index
    %c0_60 = arith.constant 0 : index
    %59 = vector.load %arg1[%c10, %c0_59, %c0_60] : memref<16x8x25xbf16, #tpu.memory_space<vmem>>, vector<1x8x25xbf16>
    %60 = vector.shape_cast %59 : vector<1x8x25xbf16> to vector<8x25xbf16>
    %c10_61 = arith.constant 10 : index
    %c0_62 = arith.constant 0 : index
    %c0_63 = arith.constant 0 : index
    %61 = vector.load %arg2[%c10_61, %c0_62, %c0_63] : memref<16x25x128xbf16, #tpu.memory_space<vmem>>, vector<1x25x128xbf16>
    %62 = vector.shape_cast %61 : vector<1x25x128xbf16> to vector<25x128xbf16>
    %cst_64 = arith.constant dense<0.000000e+00> : vector<8x128xf32>
    %63 = tpu.matmul %60, %62, %cst_64 {dimension_numbers = #tpu.dot_dimension_numbers<[1], [0], [0], [1], [0, 0, 1, 1], [], []>} : vector<8x25xbf16>, vector<25x128xbf16>, vector<8x128xf32> -> vector<8x128xf32>
    %64 = arith.addf %58, %63 : vector<8x128xf32>
    %c11 = arith.constant 11 : index
    %c0_65 = arith.constant 0 : index
    %c0_66 = arith.constant 0 : index
    %65 = vector.load %arg1[%c11, %c0_65, %c0_66] : memref<16x8x25xbf16, #tpu.memory_space<vmem>>, vector<1x8x25xbf16>
    %66 = vector.shape_cast %65 : vector<1x8x25xbf16> to vector<8x25xbf16>
    %c11_67 = arith.constant 11 : index
    %c0_68 = arith.constant 0 : index
    %c0_69 = arith.constant 0 : index
    %67 = vector.load %arg2[%c11_67, %c0_68, %c0_69] : memref<16x25x128xbf16, #tpu.memory_space<vmem>>, vector<1x25x128xbf16>
    %68 = vector.shape_cast %67 : vector<1x25x128xbf16> to vector<25x128xbf16>
    %cst_70 = arith.constant dense<0.000000e+00> : vector<8x128xf32>
    %69 = tpu.matmul %66, %68, %cst_70 {dimension_numbers = #tpu.dot_dimension_numbers<[1], [0], [0], [1], [0, 0, 1, 1], [], []>} : vector<8x25xbf16>, vector<25x128xbf16>, vector<8x128xf32> -> vector<8x128xf32>
    %70 = arith.addf %64, %69 : vector<8x128xf32>
    %c12 = arith.constant 12 : index
    %c0_71 = arith.constant 0 : index
    %c0_72 = arith.constant 0 : index
    %71 = vector.load %arg1[%c12, %c0_71, %c0_72] : memref<16x8x25xbf16, #tpu.memory_space<vmem>>, vector<1x8x25xbf16>
    %72 = vector.shape_cast %71 : vector<1x8x25xbf16> to vector<8x25xbf16>
    %c12_73 = arith.constant 12 : index
    %c0_74 = arith.constant 0 : index
    %c0_75 = arith.constant 0 : index
    %73 = vector.load %arg2[%c12_73, %c0_74, %c0_75] : memref<16x25x128xbf16, #tpu.memory_space<vmem>>, vector<1x25x128xbf16>
    %74 = vector.shape_cast %73 : vector<1x25x128xbf16> to vector<25x128xbf16>
    %cst_76 = arith.constant dense<0.000000e+00> : vector<8x128xf32>
    %75 = tpu.matmul %72, %74, %cst_76 {dimension_numbers = #tpu.dot_dimension_numbers<[1], [0], [0], [1], [0, 0, 1, 1], [], []>} : vector<8x25xbf16>, vector<25x128xbf16>, vector<8x128xf32> -> vector<8x128xf32>
    %76 = arith.addf %70, %75 : vector<8x128xf32>
    %c13 = arith.constant 13 : index
    %c0_77 = arith.constant 0 : index
    %c0_78 = arith.constant 0 : index
    %77 = vector.load %arg1[%c13, %c0_77, %c0_78] : memref<16x8x25xbf16, #tpu.memory_space<vmem>>, vector<1x8x25xbf16>
    %78 = vector.shape_cast %77 : vector<1x8x25xbf16> to vector<8x25xbf16>
    %c13_79 = arith.constant 13 : index
    %c0_80 = arith.constant 0 : index
    %c0_81 = arith.constant 0 : index
    %79 = vector.load %arg2[%c13_79, %c0_80, %c0_81] : memref<16x25x128xbf16, #tpu.memory_space<vmem>>, vector<1x25x128xbf16>
    %80 = vector.shape_cast %79 : vector<1x25x128xbf16> to vector<25x128xbf16>
    %cst_82 = arith.constant dense<0.000000e+00> : vector<8x128xf32>
    %81 = tpu.matmul %78, %80, %cst_82 {dimension_numbers = #tpu.dot_dimension_numbers<[1], [0], [0], [1], [0, 0, 1, 1], [], []>} : vector<8x25xbf16>, vector<25x128xbf16>, vector<8x128xf32> -> vector<8x128xf32>
    %82 = arith.addf %76, %81 : vector<8x128xf32>
    %c14 = arith.constant 14 : index
    %c0_83 = arith.constant 0 : index
    %c0_84 = arith.constant 0 : index
    %83 = vector.load %arg1[%c14, %c0_83, %c0_84] : memref<16x8x25xbf16, #tpu.memory_space<vmem>>, vector<1x8x25xbf16>
    %84 = vector.shape_cast %83 : vector<1x8x25xbf16> to vector<8x25xbf16>
    %c14_85 = arith.constant 14 : index
    %c0_86 = arith.constant 0 : index
    %c0_87 = arith.constant 0 : index
    %85 = vector.load %arg2[%c14_85, %c0_86, %c0_87] : memref<16x25x128xbf16, #tpu.memory_space<vmem>>, vector<1x25x128xbf16>
    %86 = vector.shape_cast %85 : vector<1x25x128xbf16> to vector<25x128xbf16>
    %cst_88 = arith.constant dense<0.000000e+00> : vector<8x128xf32>
    %87 = tpu.matmul %84, %86, %cst_88 {dimension_numbers = #tpu.dot_dimension_numbers<[1], [0], [0], [1], [0, 0, 1, 1], [], []>} : vector<8x25xbf16>, vector<25x128xbf16>, vector<8x128xf32> -> vector<8x128xf32>
    %88 = arith.addf %82, %87 : vector<8x128xf32>
    %c15 = arith.constant 15 : index
    %c0_89 = arith.constant 0 : index
    %c0_90 = arith.constant 0 : index
    %89 = vector.load %arg1[%c15, %c0_89, %c0_90] : memref<16x8x25xbf16, #tpu.memory_space<vmem>>, vector<1x8x25xbf16>
    %90 = vector.shape_cast %89 : vector<1x8x25xbf16> to vector<8x25xbf16>
    %c15_91 = arith.constant 15 : index
    %c0_92 = arith.constant 0 : index
    %c0_93 = arith.constant 0 : index
    %91 = vector.load %arg2[%c15_91, %c0_92, %c0_93] : memref<16x25x128xbf16, #tpu.memory_space<vmem>>, vector<1x25x128xbf16>
    %92 = vector.shape_cast %91 : vector<1x25x128xbf16> to vector<25x128xbf16>
    %cst_94 = arith.constant dense<0.000000e+00> : vector<8x128xf32>
    %93 = tpu.matmul %90, %92, %cst_94 {dimension_numbers = #tpu.dot_dimension_numbers<[1], [0], [0], [1], [0, 0, 1, 1], [], []>} : vector<8x25xbf16>, vector<25x128xbf16>, vector<8x128xf32> -> vector<8x128xf32>
    %94 = arith.addf %88, %93 : vector<8x128xf32>
    %c0_95 = arith.constant 0 : index
    %c0_96 = arith.constant 0 : index
    %95 = vector.load %arg3[%c0_95, %c0_96] : memref<1x128xf32, #tpu.memory_space<vmem>>, vector<1x128xf32>
    %96 = vector.broadcast %95 : vector<1x128xf32> to vector<8x128xf32>
    %97 = arith.addf %94, %96 : vector<8x128xf32>
    %cst_97 = arith.constant 0.000000e+00 : f32
    %98 = vector.broadcast %cst_97 : f32 to vector<8x128xf32>
    %99 = arith.maximumf %97, %98 : vector<8x128xf32>
    %100 = arith.truncf %99 : vector<8x128xf32> to vector<8x128xbf16>
    %c0_98 = arith.constant 0 : index
    %c0_99 = arith.constant 0 : index
    %101 = vector.load %arg4[%c0_98, %c0_99] : memref<128x128xbf16, #tpu.memory_space<vmem>>, vector<128x128xbf16>
    %cst_100 = arith.constant dense<0.000000e+00> : vector<8x128xf32>
    %102 = tpu.matmul %100, %101, %cst_100 {dimension_numbers = #tpu.dot_dimension_numbers<[1], [0], [0], [1], [0, 0, 1, 1], [], []>} : vector<8x128xbf16>, vector<128x128xbf16>, vector<8x128xf32> -> vector<8x128xf32>
    %c0_101 = arith.constant 0 : index
    %c0_102 = arith.constant 0 : index
    %103 = vector.load %arg5[%c0_101, %c0_102] : memref<1x128xf32, #tpu.memory_space<vmem>>, vector<1x128xf32>
    %104 = vector.broadcast %103 : vector<1x128xf32> to vector<8x128xf32>
    %105 = arith.addf %102, %104 : vector<8x128xf32>
    %cst_103 = arith.constant 0.000000e+00 : f32
    %106 = vector.broadcast %cst_103 : f32 to vector<8x128xf32>
    %107 = arith.maximumf %105, %106 : vector<8x128xf32>
    %108 = arith.truncf %107 : vector<8x128xf32> to vector<8x128xbf16>
    %c0_104 = arith.constant 0 : index
    %c0_105 = arith.constant 0 : index
    %109 = vector.load %arg6[%c0_104, %c0_105] : memref<128x128xbf16, #tpu.memory_space<vmem>>, vector<128x128xbf16>
    %cst_106 = arith.constant dense<0.000000e+00> : vector<8x128xf32>
    %110 = tpu.matmul %108, %109, %cst_106 {dimension_numbers = #tpu.dot_dimension_numbers<[1], [0], [0], [1], [0, 0, 1, 1], [], []>} : vector<8x128xbf16>, vector<128x128xbf16>, vector<8x128xf32> -> vector<8x128xf32>
    %c0_107 = arith.constant 0 : index
    %c0_108 = arith.constant 0 : index
    %111 = vector.load %arg7[%c0_107, %c0_108] : memref<1x128xf32, #tpu.memory_space<vmem>>, vector<1x128xf32>
    %112 = vector.broadcast %111 : vector<1x128xf32> to vector<8x128xf32>
    %113 = arith.addf %110, %112 : vector<8x128xf32>
    %c0_109 = arith.constant 0 : index
    %c0_110 = arith.constant 0 : index
    %114 = vector.load %arg8[%c0_109, %c0_110] : memref<8x128xf32, #tpu.memory_space<vmem>>, vector<8x128xf32>
    tpu.vector_store %arg8[%c0_109, %c0_110], %113 {strides = array<i32>} : memref<8x128xf32, #tpu.memory_space<vmem>>, vector<8x128xf32>,
    return
  }
  func.func @transform_0(%arg0: i32) -> (i32, i32, i32) {
    %c0_i32 = arith.constant 0 : i32
    %c0_i32_0 = arith.constant 0 : i32
    %c0_i32_1 = arith.constant 0 : i32
    return %c0_i32, %arg0, %c0_i32_0 : i32, i32, i32
  }
  func.func @transform_1(%arg0: i32) -> (i32, i32, i32) {
    %c0_i32 = arith.constant 0 : i32
    %c0_i32_0 = arith.constant 0 : i32
    %c0_i32_1 = arith.constant 0 : i32
    %c0_i32_2 = arith.constant 0 : i32
    return %c0_i32, %c0_i32_0, %c0_i32_1 : i32, i32, i32
  }
  func.func @transform_2(%arg0: i32) -> (i32, i32) {
    %c0_i32 = arith.constant 0 : i32
    %c0_i32_0 = arith.constant 0 : i32
    %c0_i32_1 = arith.constant 0 : i32
    return %c0_i32, %c0_i32_0 : i32, i32
  }
  func.func @transform_3(%arg0: i32) -> (i32, i32) {
    %c0_i32 = arith.constant 0 : i32
    %c0_i32_0 = arith.constant 0 : i32
    %c0_i32_1 = arith.constant 0 : i32
    return %c0_i32, %c0_i32_0 : i32, i32
  }
  func.func @transform_4(%arg0: i32) -> (i32, i32) {
    %c0_i32 = arith.constant 0 : i32
    %c0_i32_0 = arith.constant 0 : i32
    %c0_i32_1 = arith.constant 0 : i32
    return %c0_i32, %c0_i32_0 : i32, i32
  }
  func.func @transform_5(%arg0: i32) -> (i32, i32) {
    %c0_i32 = arith.constant 0 : i32
    %c0_i32_0 = arith.constant 0 : i32
    %c0_i32_1 = arith.constant 0 : i32
    return %c0_i32, %c0_i32_0 : i32, i32
  }
  func.func @transform_6(%arg0: i32) -> (i32, i32) {
    %c0_i32 = arith.constant 0 : i32
    %c0_i32_0 = arith.constant 0 : i32
    %c0_i32_1 = arith.constant 0 : i32
    return %c0_i32, %c0_i32_0 : i32, i32
  }
  func.func @transform_7(%arg0: i32) -> (i32, i32) {
    %c0_i32 = arith.constant 0 : i32
    %c0_i32_0 = arith.constant 0 : i32
    return %arg0, %c0_i32 : i32, i32
  }
}

</mosaic_0001>

<llo_original>
// kernel: forward.3
$region0: #{forward.3}
  #allocation0 [shape = 'u32[]', space=smem, size = 0x4, offset = 0x4, fixed_abs, tag = 'smem constant byte address 0x4 - core index']
  #allocation1 [shape = 'u32[144,128]{1,0:T(1,128)}', space=vmem, size = 0x12000, scoped, tag = 'internal scratch']
  %s0 = inlined_call_operand.vmem [shape: bf16[16,512], index: 0, kind: input, shape index: {}]
  %s1 = inlined_call_operand.vmem [shape: bf16[24,16], index: 1, kind: input, shape index: {}]
  %s2 = inlined_call_operand.vmem [shape: f32[6,1], index: 2, kind: input, shape index: {}]
  %s3 = inlined_call_operand.vmem [shape: bf16[6,512], index: 3, kind: output, shape index: {}]
  %s4 = sld [smem:[#allocation0]]
  $region83: #{forward.3} parent=0
    _
  %s6 = ssub.s32 1, %s4
  %s7 = scalar_select 0, %s6, %s4
  $region1: #{forward.3} parent=0
    #allocation2 [shape = 'u8[16384]{0}', space=vmem, size = 0x4000, scoped, tag = 'input window, operand 0']
    loop: start=0, step=1, limit=4
    $region2: #{forward.3} parent=1 // loop_pre_header
      _
    $region3: #{forward.3} parent=1 // loop_header
      %s9 = sphi 0, %s13
      %p10 = scmp.ge.s32.totalorder %s9, 4
      %s19 = sphi 0, %s21
      %s22 = sphi 0, %s19
      %s23 = sphi 0, %s22
      %s39 = sphi 0, %s23
      %s43 = sphi 0, %s43
      %s45 = sphi 0, %s43
      %s46 = sphi 0, %s45
      %s60 = sphi 0, %s46
      %s64 = sphi 0, %s64
      %s66 = sphi 0, %s64
      %s67 = sphi 0, %s66
      %s81 = sphi 0, %s67
      %s87 = sphi 0, %s89
      %s90 = sphi 0, %s87
      %s91 = sphi 0, %s90
      %s107 = sphi 0, %s91
    $region4: #{forward.3} parent=1 // loop_header_branch
      %12 = sbr.rel (%p10) target = $region8
    $region5: #{forward.3} parent=1 // loop_body
      %s14 = ssub.s32 %s9, 1
      %s15 = ssub.s32 %s9, 2
      %s16 = sadd.s32 %s9, 1
      %s17 = ssub.s32 %s9, %s16
      %p18 = scmp.eq.s32.totalorder %s17, 0
      %s20 = sadd.s32 %s19, 1
      %s21 = scalar_select %p18, %s19, %s20
      %p24 = pneg %p18
      %p25 = scmp.eq.s32.totalorder %s9, 1
      %p26 = por %p24, %p25
      %p27 = scmp.ne.s32.totalorder %s19, %s22
      %p28 = scmp.eq.s32.totalorder %s9, 0
      %p29 = por %p27, %p28
      %p30 = scmp.ne.s32.totalorder %s19, %s22
      %p31 = scmp.eq.s32.totalorder %s14, 1
      %p32 = por %p30, %p31
      %p33 = scmp.ne.s32.totalorder %s22, %s23
      %p34 = scmp.eq.s32.totalorder %s14, 0
      %p35 = por %p33, %p34
      %p36 = scmp.ne.s32.totalorder %s22, %s23
      %p37 = scmp.eq.s32.totalorder %s15, 1
      %p38 = por %p36, %p37
      %p40 = scmp.ne.s32.totalorder %s23, %s39
      %p41 = scmp.eq.s32.totalorder %s15, 0
      %p42 = por %p40, %p41
      %s44 = sadd.s32 %s43, 1
      %p47 = scmp.eq.s32.totalorder %s9, 1
      %p48 = scmp.ne.s32.totalorder %s43, %s45
      %p49 = scmp.eq.s32.totalorder %s9, 0
      %p50 = por %p48, %p49
      %p51 = scmp.ne.s32.totalorder %s43, %s45
      %p52 = scmp.eq.s32.totalorder %s14, 1
      %p53 = por %p51, %p52
      %p54 = scmp.ne.s32.totalorder %s45, %s46
      %p55 = scmp.eq.s32.totalorder %s14, 0
      %p56 = por %p54, %p55
      %p57 = scmp.ne.s32.totalorder %s45, %s46
      %p58 = scmp.eq.s32.totalorder %s15, 1
      %p59 = por %p57, %p58
      %p61 = scmp.ne.s32.totalorder %s46, %s60
      %p62 = scmp.eq.s32.totalorder %s15, 0
      %p63 = por %p61, %p62
      %s65 = sadd.s32 %s64, 1
      %p68 = scmp.eq.s32.totalorder %s9, 1
      %p69 = scmp.ne.s32.totalorder %s64, %s66
      %p70 = scmp.eq.s32.totalorder %s9, 0
      %p71 = por %p69, %p70
      %p72 = scmp.ne.s32.totalorder %s64, %s66
      %p73 = scmp.eq.s32.totalorder %s14, 1
      %p74 = por %p72, %p73
      %p75 = scmp.ne.s32.totalorder %s66, %s67
      %p76 = scmp.eq.s32.totalorder %s14, 0
      %p77 = por %p75, %p76
      %p78 = scmp.ne.s32.totalorder %s66, %s67
      %p79 = scmp.eq.s32.totalorder %s15, 1
      %p80 = por %p78, %p79
      %p82 = scmp.ne.s32.totalorder %s67, %s81
      %p83 = scmp.eq.s32.totalorder %s15, 0
      %p84 = por %p82, %p83
      %s85 = ssub.s32 %s9, %s16
      %p86 = scmp.eq.s32.totalorder %s85, 0
      %s88 = sadd.s32 %s87, 1
      %s89 = scalar_select %p86, %s87, %s88
      %p92 = pneg %p86
      %p93 = scmp.eq.s32.totalorder %s9, 1
      %p94 = por %p92, %p93
      %p95 = scmp.ne.s32.totalorder %s87, %s90
      %p96 = scmp.eq.s32.totalorder %s9, 0
      %p97 = por %p95, %p96
      %p98 = scmp.ne.s32.totalorder %s87, %s90
      %p99 = scmp.eq.s32.totalorder %s14, 1
      %p100 = por %p98, %p99
      %p101 = scmp.ne.s32.totalorder %s90, %s91
      %p102 = scmp.eq.s32.totalorder %s14, 0
      %p103 = por %p101, %p102
      %p104 = scmp.ne.s32.totalorder %s90, %s91
      %p105 = scmp.eq.s32.totalorder %s15, 1
      %p106 = por %p104, %p105
      %p108 = scmp.ne.s32.totalorder %s91, %s107
      %p109 = scmp.eq.s32.totalorder %s15, 0
      %p110 = por %p108, %p109
      %p111 = scmp.le.s32.totalorder 1, %s9
      %p112 = scmp.lt.s32.totalorder %s9, 3
      %p113 = pnand %p111, %p112
      %p114 = pneg %p113
      // Predicated region
      $region9: #{forward.3} parent=5 // pred_check
        _
      $region10: #{forward.3} parent=5 // pred_check_branch
        %116 = sbr.rel (%p113) target = $region12
      $region11: #{forward.3} parent=5 // pred_region
        %s117 = ssub.s32 %s9, 1
        // Predicated region
        $region13: #{forward.3} parent=11 // pred_check
          %p118 = pneg %p56
        $region14: #{forward.3} parent=11 // pred_check_branch
          %120 = sbr.rel (%p118) target = $region16
        $region15: #{forward.3} parent=11 // pred_region
          _
        $region16: #{forward.3} parent=11 // pred_fallthru
          _
        // Predicated region
        $region17: #{forward.3} parent=11 // pred_check
          %p121 = pneg %p77
        $region18: #{forward.3} parent=11 // pred_check_branch
          %123 = sbr.rel (%p121) target = $region20
        $region19: #{forward.3} parent=11 // pred_region
          _
        $region20: #{forward.3} parent=11 // pred_fallthru
          _
      $region12: #{forward.3} parent=5 // pred_fallthru
        _
      %p124 = scmp.lt.s32.totalorder %s9, 2
      // Predicated region
      $region21: #{forward.3} parent=5 // pred_check
        %p125 = pneg %p124
      $region22: #{forward.3} parent=5 // pred_check_branch
        %127 = sbr.rel (%p125) target = $region24
      $region23: #{forward.3} parent=5 // pred_region
        // Predicated region
        $region25: #{forward.3} parent=23 // pred_check
          %p128 = pneg %p29
        $region26: #{forward.3} parent=23 // pred_check_branch
          %130 = sbr.rel (%p128) target = $region28
        $region27: #{forward.3} parent=23 // pred_region
          %s131 = sand.u32 %s19, 1
          %s132 = sand.u32 %s19, 1
          %s133 = smul.addr %s132, 16
          %s134 = scalar_lea.vmem [#allocation2], %s133
          %s135 = smul.u32 2, %s9
          %s136 = smul.addr %s135, 4
          %s137 = scalar_lea.vmem %s0, %s136
          // Predicated region
          $region29: #{forward.3} parent=27 // pred_check
            _
          $region30: #{forward.3} parent=27 // pred_check_branch
            %139 = sbr.rel (0) target = $region32
          $region31: #{forward.3} parent=27 // pred_region
            // Predicated region
            $region33: #{forward.3} parent=31 // pred_check
              _
            $region34: #{forward.3} parent=31 // pred_check_branch
              %141 = sbr.rel (0) target = $region36
            $region35: #{forward.3} parent=31 // pred_region
              // Predicated region
              $region48: #{forward.3} parent=35 // pred_check
                _
              $region49: #{forward.3} parent=35 // pred_check_branch
                %158 = sbr.rel (0) target = $region51
              $region50: #{forward.3} parent=35 // pred_region
                loop: start=0, step=1, limit=1
                $region52: #{forward.3} parent=50 // loop_pre_header
                  _
                $region53: #{forward.3} parent=50 // loop_header
                  %s160 = sphi 0, %s164
                  %p161 = scmp.ge.s32.totalorder %s160, 1
                  %s165 = sphi %s137, %s137
                  %s166 = sphi %s134, %s134
                $region54: #{forward.3} parent=50 // loop_header_branch
                  %163 = sbr.rel (%p161) target = $region58
                $region55: #{forward.3} parent=50 // loop_body
                  %v167 = vld [vmem:[%s165] sm:$0xff]
                  %168 = vst [vmem:[%s166] sm:$0xff] %v167
                  %v169 = vld [vmem:[%s165 + $0x10] sm:$0xff]
                  %170 = vst [vmem:[%s166 + $0x8] sm:$0xff] %v169
                $region56: #{forward.3} parent=50 // loop_footer
                  %s164 = sadd.s32 1, %s160
                $region57: #{forward.3} parent=50 // loop_footer_branch
                  %159 = sbr.rel target = $region53
                $region58: #{forward.3} parent=50 // loop_exit
                  _
              $region51: #{forward.3} parent=35 // pred_fallthru
                _
              // Predicated region
              $region59: #{forward.3} parent=35 // pred_check
                _
              $region60: #{forward.3} parent=35 // pred_check_branch
                %172 = sbr.rel target = $region62
              $region61: #{forward.3} parent=35 // pred_region
                _
              $region62: #{forward.3} parent=35 // pred_fallthru
                _
            $region36: #{forward.3} parent=31 // pred_fallthru
              _
            // Predicated region
            $region37: #{forward.3} parent=31 // pred_check
              _
            $region38: #{forward.3} parent=31 // pred_check_branch
              %143 = sbr.rel target = $region40
            $region39: #{forward.3} parent=31 // pred_region
              loop: start=0, step=1, limit=1
              $region41: #{forward.3} parent=39 // loop_pre_header
                _
              $region42: #{forward.3} parent=39 // loop_header
                %s146 = sphi 0, %s150
                %p147 = scmp.ge.s32.totalorder %s146, 1
                %s151 = sphi %s137, %s137
                %s152 = sphi %s134, %s134
              $region43: #{forward.3} parent=39 // loop_header_branch
                %149 = sbr.rel (%p147) target = $region47
              $region44: #{forward.3} parent=39 // loop_body
                %v153 = vld [vmem:[%s151] sm:$0xff]
                %154 = vst [vmem:[%s152] sm:$0xff] %v153
                %v155 = vld [vmem:[%s151 + $0x10] sm:$0xff]
                %156 = vst [vmem:[%s152 + $0x8] sm:$0xff] %v155
              $region45: #{forward.3} parent=39 // loop_footer
                %s150 = sadd.s32 1, %s146
              $region46: #{forward.3} parent=39 // loop_footer_branch
                %145 = sbr.rel target = $region42
              $region47: #{forward.3} parent=39 // loop_exit
                _
            $region40: #{forward.3} parent=31 // pred_fallthru
              _
          $region32: #{forward.3} parent=27 // pred_fallthru
            _
          %173 = vnop
        $region28: #{forward.3} parent=23 // pred_fallthru
          _
      $region24: #{forward.3} parent=5 // pred_fallthru
        _
      %p174 = scmp.le.s32.totalorder 1, %s9
      %p175 = scmp.lt.s32.totalorder %s9, 3
      %p176 = pnand %p174, %p175
      %p177 = pneg %p176
      // Predicated region
      $region63: #{forward.3} parent=5 // pred_check
        _
      $region64: #{forward.3} parent=5 // pred_check_branch
        %179 = sbr.rel (%p176) target = $region66
      $region65: #{forward.3} parent=5 // pred_region
        %s180 = ssub.s32 %s9, 1
        %s181 = sand.u32 %s22, 1
        %s182 = sand.u32 %s22, 1
        %s183 = smul.addr %s182, 16
        %s184 = scalar_lea.vmem [#allocation2], %s183
        // Predicated region
        $region67: #{forward.3} parent=65 // pred_check
          %p185 = pneg %p35
        $region68: #{forward.3} parent=65 // pred_check_branch
          %187 = sbr.rel (%p185) target = $region70
        $region69: #{forward.3} parent=65 // pred_region
          _
        $region70: #{forward.3} parent=65 // pred_fallthru
          _
        %s188 = sand.u32 %s22, 1
        %s189 = sand.u32 %s22, 1
        %s190 = smul.addr %s189, 16
        %s191 = scalar_lea.vmem [#allocation2], %s190
        %p192 = pneg %p35
        %p193 = pneg %p32
        %p194 = pneg %p56
        %p195 = pneg %p53
        %p196 = pneg %p77
        %p197 = pneg %p74
        %p198 = pneg %p103
        %p199 = pneg %p100
        %s200 = smul.u32 2, %s14
        %p201 = scmp.lt.s32.totalorder %s200, 3
        %s202 = scalar_select %p201, %s200, 3
        %s203 = smul.addr %s202, 4
        %s204 = scalar_lea.vmem %s3, %s203
        %s205 = smul.u32 2, %s14
        %s206 = smul.u32 2, %s14
        %p207 = scmp.lt.s32.totalorder %s206, 3
        %s208 = scalar_select %p207, %s206, 3
        %s209 = smul.addr %s208, 4
        %s210 = scalar_lea.vmem %s3, %s209
        %s211 = smul.u32 2, %s14
        %v213 = vld [vmem:[%s1] sm:$0xf]
        %v214 = vld [vmem:[%s1 + $0x4] sm:$0xf]
        %v215 = vld [vmem:[%s1 + $0x8] sm:$0xf]
        %v216 = vld [vmem:[%s184] sm:$0xff]
        %v217 = vld [vmem:[%s184 + $0x8] sm:$0xff]
        %v221 = vunpack.c.l.b16 %v213
        %v222 = vunpack.c.l.b16 %v214
        %v223 = vunpack.c.l.b16 %v215
        %v224 = vpack.c.b16 %v222, %v221
        %v225 = vpack.c.b16 %v223, %v223
        %v228 = vunpack.c.l.b16 %v216
        %v229 = vunpack.c.h.b16 %v216
        %v230 = vunpack.c.l.b16 %v217
        %v231 = vunpack.c.h.b16 %v217
        %v232 = vpack.c.b16 %v230, %v228
        %v233 = vpack.c.b16 %v231, %v229
        %vm236 = vcmask 130048
        %v238 = vsel %vm236, %v224, 0
        %v241 = vsel %vm236, %v225, 0
        %243 = vmatprep.subr.bf16.mxu0 %v233
        %244 = vmatpush1.bf16.msra.mxu0 %v232
        %245 = vmatprep.subr.bf16.mxu0 0
        %246 = vmatpush1.bf16.msra.mxu0 0
        %247 = vmatprep.subr.bf16.mxu0 0
        %248 = vmatpush1.bf16.msra.mxu0 0
        %249 = vmatprep.subr.bf16.mxu0 0
        %250 = vmatpush1.bf16.msra.mxu0 0
        %251 = vmatprep.subr.bf16.mxu0 0
        %252 = vmatpush1.bf16.msra.mxu0 0
        %253 = vmatprep.subr.bf16.mxu0 0
        %254 = vmatpush1.bf16.msra.mxu0 0
        %255 = vmatprep.subr.bf16.mxu0 0
        %256 = vmatpush1.bf16.msra.mxu0 0
        %257 = vmatprep.subr.bf16.mxu0 0
        %258 = vmatpush1.bf16.msra.mxu0 0
        %259 = vmatprep.subr.bf16.mxu0 0
        %260 = vmatpush1.bf16.msra.mxu0 0
        %261 = vmatprep.subr.bf16.mxu0 0
        %262 = vmatpush1.bf16.msra.mxu0 0
        %263 = vmatprep.subr.bf16.mxu0 0
        %264 = vmatpush1.bf16.msra.mxu0 0
        %265 = vmatprep.subr.bf16.mxu0 0
        %266 = vmatpush1.bf16.msra.mxu0 0
        %267 = vmatprep.subr.bf16.mxu0 0
        %268 = vmatpush1.bf16.msra.mxu0 0
        %269 = vmatprep.subr.bf16.mxu0 0
        %270 = vmatpush1.bf16.msra.mxu0 0
        %271 = vmatprep.subr.bf16.mxu0 0
        %272 = vmatpush1.bf16.msra.mxu0 0
        %273 = vmatprep.subr.bf16.mxu0 0
        %274 = vmatpush1.bf16.msra.mxu0 0
        %275 = vmatprep.mubr.bf16.mxu0 0
        %276 = vmatmul.mubr.bf16.gmra.mrb[0].mxu0 %v238
        %v277 = vpop.f32.mrb[0].mxu0
        %v278 = vadd.f32 0.0, %v277
        %v279 = vpop.f32.mrb[0].mxu0
        %v280 = vadd.f32 0.0, %v279
        %v281 = vpop.f32.mrb[0].mxu0
        %v282 = vadd.f32 0.0, %v281
        %v283 = vpop.f32.mrb[0].mxu0
        %v284 = vadd.f32 0.0, %v283
        %285 = vmatprep.mubr.bf16.mxu0 0
        %286 = vmatmul.mubr.bf16.gmra.mrb[0].mxu0 %v241
        %v287 = vpop.f32.mrb[0].mxu0
        %v288 = vadd.f32 0.0, %v287
        %v289 = vpop.f32.mrb[0].mxu0
        %v290 = vadd.f32 0.0, %v289
        %v291 = vpop.f32.mrb[0].mxu0
        %v292 = vpop.f32.mrb[0].mxu0
        %293 = vdwg.mxu0
        %vm298 = vcmask 1041408
        %v299 = vrot.slane %v278, 6
        %v300 = vrot.slane %v282, 6
        %v301 = vsel %vm298, %v299, %v300
        %v302 = vrot.slane %v280, 6
        %v303 = vrot.slane %v284, 6
        %v304 = vsel %vm298, %v302, %v303
        %v307 = vmax.f32 %v278, %v301
        %v308 = vmax.f32 %v280, %v304
        %vm311 = vcmask 1043456
        %v312 = vrot.slane %v282, 4
        %v313 = vrot.slane %v288, 4
        %v314 = vsel %vm311, %v312, %v313
        %v315 = vrot.slane %v284, 4
        %v316 = vrot.slane %v290, 4
        %v317 = vsel %vm311, %v315, %v316
        %v320 = vmax.f32 %v307, %v314
        %v321 = vmax.f32 %v308, %v317
        %v322 = vrot.slane %v288, 2
        %v323 = vrot.slane %v290, 2
        %v326 = vmax.f32 %v320, %v322
        %v327 = vmax.f32 %v321, %v323
        %v328 = vld [vmem:[%s2] sm:$0x3f]
        %330 = vset.pattern.permute.xlu0 0
        %331 = vperm.xlu0 %330, %v328
        %v332 = vpop.permute.xlu0 %331
        %v334 = vadd.f32 %v326, %v332
        %v335 = vadd.f32 %v327, %v332
        %v336 = vmax.f32 %v334, 0.0
        %v337 = vmax.f32 %v335, 0.0
        %v338 = vpack.c.bf16 %v336, %v336
        %v339 = vpack.c.bf16 %v337, %v337
        %v342 = vunpack.c.l.b16 %v338
        %v343 = vunpack.c.l.b16 %v339
        %v344 = vpack.c.b16 %v343, %v342
        %346 = vst [vmem:[%s210] sm:$0x77] %v344
        %s347 = smul.u32 2, %s14
        %p348 = scmp.lt.s32.totalorder %s347, 3
        %s349 = scalar_select %p348, %s347, 3
        %s350 = smul.addr %s349, 4
        %s351 = scalar_lea.vmem %s3, %s350
        // Predicated region
        $region71: #{forward.3} parent=65 // pred_check
          %p352 = pneg %p100
        $region72: #{forward.3} parent=65 // pred_check_branch
          %354 = sbr.rel (%p352) target = $region74
        $region73: #{forward.3} parent=65 // pred_region
          %s355 = smul.u32 2, %s14
        $region74: #{forward.3} parent=65 // pred_fallthru
          _
      $region66: #{forward.3} parent=5 // pred_fallthru
        _
      %p356 = scmp.le.s32.totalorder 2, %s9
      // Predicated region
      $region75: #{forward.3} parent=5 // pred_check
        %p357 = pneg %p356
      $region76: #{forward.3} parent=5 // pred_check_branch
        %359 = sbr.rel (%p357) target = $region78
      $region77: #{forward.3} parent=5 // pred_region
        %s360 = ssub.s32 %s9, 2
        // Predicated region
        $region79: #{forward.3} parent=77 // pred_check
          %p361 = pneg %p106
        $region80: #{forward.3} parent=77 // pred_check_branch
          %363 = sbr.rel (%p361) target = $region82
        $region81: #{forward.3} parent=77 // pred_region
          %s364 = smul.u32 2, %s15
          %p365 = scmp.lt.s32.totalorder %s364, 3
          %s366 = scalar_select %p365, %s364, 3
          %s367 = smul.addr %s366, 4
          %s368 = scalar_lea.vmem %s3, %s367
        $region82: #{forward.3} parent=77 // pred_fallthru
          _
      $region78: #{forward.3} parent=5 // pred_fallthru
        _
    $region6: #{forward.3} parent=1 // loop_footer
      %s13 = sadd.s32 1, %s9
    $region7: #{forward.3} parent=1 // loop_footer_branch
      %8 = sbr.rel target = $region3
    $region8: #{forward.3} parent=1 // loop_exit
      _

// kernel: forward.4
$region0: #{forward.4}
  #allocation0 [shape = 'u32[]', space=smem, size = 0x4, offset = 0x4, fixed_abs, tag = 'smem constant byte address 0x4 - core index']
  #allocation1 [shape = 'u32[144,128]{1,0:T(1,128)}', space=vmem, size = 0x12000, scoped, tag = 'internal scratch']
  %s0 = inlined_call_operand.vmem [shape: bf16[216,128], index: 0, kind: input, shape index: {}]
  %s1 = inlined_call_operand.vmem [shape: bf16[64,216], index: 1, kind: input, shape index: {}]
  %s2 = inlined_call_operand.vmem [shape: f32[16,1], index: 2, kind: input, shape index: {}]
  %s3 = inlined_call_operand.vmem [shape: bf16[16,128], index: 3, kind: output, shape index: {}]
  %s4 = sld [smem:[#allocation0]]
  $region22: #{forward.4} parent=0
    _
  %s6 = ssub.s32 1, %s4
  %s7 = scalar_select 0, %s6, %s4
  // Predicated region
  $region2: #{forward.4} parent=0 // pred_check
    _
  $region3: #{forward.4} parent=0 // pred_check_branch
    %9 = sbr.rel (0) target = $region5
  $region4: #{forward.4} parent=0 // pred_region
    _
  $region5: #{forward.4} parent=0 // pred_fallthru
    _
  // Predicated region
  $region6: #{forward.4} parent=0 // pred_check
    _
  $region7: #{forward.4} parent=0 // pred_check_branch
    %11 = sbr.rel (0) target = $region9
  $region8: #{forward.4} parent=0 // pred_region
    _
  $region9: #{forward.4} parent=0 // pred_fallthru
    _
  // Predicated region
  $region10: #{forward.4} parent=0 // pred_check
    _
  $region11: #{forward.4} parent=0 // pred_check_branch
    %13 = sbr.rel (0) target = $region13
  $region12: #{forward.4} parent=0 // pred_region
    _
  $region13: #{forward.4} parent=0 // pred_fallthru
    _
  %v15 = vld [vmem:[%s1] sm:$0xff]
  %v16 = vld [vmem:[%s1 + $0x8] sm:$0xff]
  %v17 = vld [vmem:[%s1 + $0x10] sm:$0xff]
  %v18 = vld [vmem:[%s1 + $0x18] sm:$0xff]
  %v19 = vld [vmem:[%s1 + $0x20] sm:$0xff]
  %v20 = vld [vmem:[%s1 + $0x28] sm:$0xff]
  %v21 = vld [vmem:[%s1 + $0x30] sm:$0xff]
  %v22 = vld [vmem:[%s1 + $0x38] sm:$0xff]
  %v23 = vld [vmem:[%s0] sm:$0xf]
  %v24 = vld [vmem:[%s0 + $0x4] sm:$0xf]
  %v25 = vld [vmem:[%s0 + $0x8] sm:$0xf]
  %v26 = vld [vmem:[%s0 + $0xc] sm:$0xf]
  %v27 = vld [vmem:[%s0 + $0x10] sm:$0xf]
  %v28 = vld [vmem:[%s0 + $0x14] sm:$0xf]
  %v29 = vld [vmem:[%s0 + $0x18] sm:$0xf]
  %v30 = vld [vmem:[%s0 + $0x1c] sm:$0xf]
  %v31 = vld [vmem:[%s0 + $0x20] sm:$0xf]
  %v32 = vld [vmem:[%s0 + $0x24] sm:$0xf]
  %v33 = vld [vmem:[%s0 + $0x28] sm:$0xf]
  %v34 = vld [vmem:[%s0 + $0x2c] sm:$0xf]
  %v35 = vld [vmem:[%s0 + $0x30] sm:$0xf]
  %v36 = vld [vmem:[%s0 + $0x34] sm:$0xf]
  %v37 = vld [vmem:[%s0 + $0x38] sm:$0xf]
  %v38 = vld [vmem:[%s0 + $0x3c] sm:$0xf]
  %v39 = vld [vmem:[%s0 + $0x40] sm:$0xf]
  %v40 = vld [vmem:[%s0 + $0x44] sm:$0xf]
  %v41 = vld [vmem:[%s0 + $0x48] sm:$0xf]
  %v42 = vld [vmem:[%s0 + $0x4c] sm:$0xf]
  %v43 = vld [vmem:[%s0 + $0x50] sm:$0xf]
  %v44 = vld [vmem:[%s0 + $0x54] sm:$0xf]
  %v45 = vld [vmem:[%s0 + $0x58] sm:$0xf]
  %v46 = vld [vmem:[%s0 + $0x5c] sm:$0xf]
  %v47 = vld [vmem:[%s0 + $0x60] sm:$0xf]
  %v48 = vld [vmem:[%s0 + $0x64] sm:$0xf]
  %v49 = vld [vmem:[%s0 + $0x68] sm:$0xf]
  %v58 = vunpack.c.l.b16 %v15
  %v59 = vunpack.c.h.b16 %v15
  %v60 = vunpack.c.l.b16 %v16
  %v61 = vunpack.c.h.b16 %v16
  %v62 = vunpack.c.l.b16 %v17
  %v63 = vunpack.c.h.b16 %v17
  %v64 = vunpack.c.l.b16 %v18
  %v65 = vunpack.c.h.b16 %v18
  %v66 = vunpack.c.l.b16 %v19
  %v67 = vunpack.c.h.b16 %v19
  %v68 = vunpack.c.l.b16 %v20
  %v69 = vunpack.c.h.b16 %v20
  %v70 = vunpack.c.l.b16 %v21
  %v71 = vunpack.c.h.b16 %v21
  %v72 = vunpack.c.l.b16 %v22
  %v73 = vunpack.c.h.b16 %v22
  %v74 = vpack.c.b16 %v60, %v58
  %v75 = vpack.c.b16 %v61, %v59
  %v76 = vpack.c.b16 %v64, %v62
  %v77 = vpack.c.b16 %v65, %v63
  %v78 = vpack.c.b16 %v68, %v66
  %v79 = vpack.c.b16 %v69, %v67
  %v80 = vpack.c.b16 %v72, %v70
  %v81 = vpack.c.b16 %v73, %v71
  %v113 = vunpack.c.l.b16 %v23
  %v114 = vunpack.c.l.b16 %v24
  %v115 = vunpack.c.l.b16 %v25
  %v116 = vunpack.c.l.b16 %v26
  %v117 = vunpack.c.l.b16 %v27
  %v118 = vunpack.c.l.b16 %v28
  %v119 = vunpack.c.l.b16 %v29
  %v120 = vunpack.c.l.b16 %v30
  %v121 = vunpack.c.l.b16 %v31
  %v122 = vunpack.c.l.b16 %v32
  %v123 = vunpack.c.l.b16 %v33
  %v124 = vunpack.c.l.b16 %v34
  %v125 = vunpack.c.l.b16 %v35
  %v126 = vunpack.c.l.b16 %v36
  %v127 = vunpack.c.l.b16 %v37
  %v128 = vunpack.c.l.b16 %v38
  %v129 = vunpack.c.l.b16 %v39
  %v130 = vunpack.c.l.b16 %v40
  %v131 = vunpack.c.l.b16 %v41
  %v132 = vunpack.c.l.b16 %v42
  %v133 = vunpack.c.l.b16 %v43
  %v134 = vunpack.c.l.b16 %v44
  %v135 = vunpack.c.l.b16 %v45
  %v136 = vunpack.c.l.b16 %v46
  %v137 = vunpack.c.l.b16 %v47
  %v138 = vunpack.c.l.b16 %v48
  %v139 = vunpack.c.l.b16 %v49
  %v140 = vpack.c.b16 %v114, %v113
  %v141 = vpack.c.b16 %v116, %v115
  %v142 = vpack.c.b16 %v118, %v117
  %v143 = vpack.c.b16 %v120, %v119
  %v144 = vpack.c.b16 %v122, %v121
  %v145 = vpack.c.b16 %v124, %v123
  %v146 = vpack.c.b16 %v126, %v125
  %v147 = vpack.c.b16 %v128, %v127
  %v148 = vpack.c.b16 %v130, %v129
  %v149 = vpack.c.b16 %v132, %v131
  %v150 = vpack.c.b16 %v134, %v133
  %v151 = vpack.c.b16 %v136, %v135
  %v152 = vpack.c.b16 %v138, %v137
  %v153 = vpack.c.b16 %v139, %v139
  %vm167 = vcmask 719872
  %v169 = vsel %vm167, %v75, 0
  %v172 = vsel %vm167, %v77, 0
  %v175 = vsel %vm167, %v79, 0
  %v178 = vsel %vm167, %v81, 0
  %vm180 = vcmask 1043456
  %v182 = vsel %vm180, %v153, 0
  %184 = vmatprep.subr.bf16.mxu0 0
  %185 = vmatpush1.bf16.msra.mxu0 %v140
  %186 = vmatprep.subr.bf16.mxu0 0
  %187 = vmatpush1.bf16.msra.mxu0 %v141
  %188 = vmatprep.subr.bf16.mxu0 0
  %189 = vmatpush1.bf16.msra.mxu0 %v142
  %190 = vmatprep.subr.bf16.mxu0 0
  %191 = vmatpush1.bf16.msra.mxu0 %v143
  %192 = vmatprep.subr.bf16.mxu0 0
  %193 = vmatpush1.bf16.msra.mxu0 %v144
  %194 = vmatprep.subr.bf16.mxu0 0
  %195 = vmatpush1.bf16.msra.mxu0 %v145
  %196 = vmatprep.subr.bf16.mxu0 0
  %197 = vmatpush1.bf16.msra.mxu0 %v146
  %198 = vmatprep.subr.bf16.mxu0 0
  %199 = vmatpush1.bf16.msra.mxu0 %v147
  %200 = vmatprep.subr.bf16.mxu0 0
  %201 = vmatpush1.bf16.msra.mxu0 %v148
  %202 = vmatprep.subr.bf16.mxu0 0
  %203 = vmatpush1.bf16.msra.mxu0 %v149
  %204 = vmatprep.subr.bf16.mxu0 0
  %205 = vmatpush1.bf16.msra.mxu0 %v150
  %206 = vmatprep.subr.bf16.mxu0 0
  %207 = vmatpush1.bf16.msra.mxu0 %v151
  %208 = vmatprep.subr.bf16.mxu0 0
  %209 = vmatpush1.bf16.msra.mxu0 %v152
  %210 = vmatprep.subr.bf16.mxu0 0
  %211 = vmatpush1.bf16.msra.mxu0 %v182
  %212 = vmatprep.subr.bf16.mxu0 0
  %213 = vmatpush1.bf16.msra.mxu0 0
  %214 = vmatprep.subr.bf16.mxu0 0
  %215 = vmatpush1.bf16.msra.mxu0 0
  %216 = vmatprep.mubr.bf16.mxu0 %v169
  %217 = vmatmul.mubr.bf16.gmra.mrb[0].mxu0 %v74
  %v218 = vpop.f32.mrb[0].mxu0
  %v219 = vadd.f32 0.0, %v218
  %v220 = vpop.f32.mrb[0].mxu0
  %v221 = vpop.f32.mrb[0].mxu0
  %v222 = vadd.f32 0.0, %v221
  %v223 = vpop.f32.mrb[0].mxu0
  %224 = vmatprep.mubr.bf16.mxu0 %v172
  %225 = vmatmul.mubr.bf16.gmra.mrb[0].mxu0 %v76
  %v226 = vpop.f32.mrb[0].mxu0
  %v227 = vadd.f32 0.0, %v226
  %v228 = vpop.f32.mrb[0].mxu0
  %v229 = vpop.f32.mrb[0].mxu0
  %v230 = vadd.f32 0.0, %v229
  %v231 = vpop.f32.mrb[0].mxu0
  %232 = vmatprep.mubr.bf16.mxu0 %v175
  %233 = vmatmul.mubr.bf16.gmra.mrb[0].mxu0 %v78
  %v234 = vpop.f32.mrb[0].mxu0
  %v235 = vadd.f32 0.0, %v234
  %v236 = vpop.f32.mrb[0].mxu0
  %v237 = vpop.f32.mrb[0].mxu0
  %v238 = vadd.f32 0.0, %v237
  %v239 = vpop.f32.mrb[0].mxu0
  %240 = vmatprep.mubr.bf16.mxu0 %v178
  %241 = vmatmul.mubr.bf16.gmra.mrb[0].mxu0 %v80
  %v242 = vpop.f32.mrb[0].mxu0
  %v243 = vadd.f32 0.0, %v242
  %v244 = vpop.f32.mrb[0].mxu0
  %v245 = vpop.f32.mrb[0].mxu0
  %v246 = vadd.f32 0.0, %v245
  %v247 = vpop.f32.mrb[0].mxu0
  %248 = vdwg.mxu0
  %v249 = vmax.f32 %v219, %v227
  %v250 = vmax.f32 %v222, %v230
  %v251 = vmax.f32 %v249, %v235
  %v252 = vmax.f32 %v250, %v238
  %v253 = vmax.f32 %v251, %v243
  %v254 = vmax.f32 %v252, %v246
  %v255 = vld [vmem:[%s2] sm:$0xff]
  %v256 = vld [vmem:[%s2 + $0x8] sm:$0xff]
  %258 = vset.pattern.permute.xlu0 0
  %259 = vperm.xlu0 %258, %v255
  %v260 = vpop.permute.xlu0 %259
  %263 = vset.pattern.permute.xlu0 0
  %264 = vperm.xlu0 %263, %v256
  %v265 = vpop.permute.xlu0 %264
  %v267 = vadd.f32 %v253, %v260
  %v268 = vadd.f32 %v254, %v265
  %v269 = vmax.f32 %v267, 0.0
  %v270 = vmax.f32 %v268, 0.0
  %v271 = vpack.c.bf16 %v270, %v269
  %v273 = vunpack.c.l.b16 %v271
  %v274 = vunpack.c.h.b16 %v271
  %v275 = vpack.c.b16 %v273, %v273
  %v276 = vpack.c.b16 %v274, %v274
  %279 = vst [vmem:[%s3] sm:$0xf] %v275
  %280 = vst [vmem:[%s3 + $0x4] sm:$0xf] %v276
  // Predicated region
  $region14: #{forward.4} parent=0 // pred_check
    _
  $region15: #{forward.4} parent=0 // pred_check_branch
    %282 = sbr.rel (0) target = $region17
  $region16: #{forward.4} parent=0 // pred_region
    _
  $region17: #{forward.4} parent=0 // pred_fallthru
    _
  // Predicated region
  $region18: #{forward.4} parent=0 // pred_check
    _
  $region19: #{forward.4} parent=0 // pred_check_branch
    %284 = sbr.rel (0) target = $region21
  $region20: #{forward.4} parent=0 // pred_region
    _
  $region21: #{forward.4} parent=0 // pred_fallthru
    _

// kernel: forward.5
$region0: #{forward.5}
  #allocation0 [shape = 'u32[]', space=smem, size = 0x4, offset = 0x4, fixed_abs, tag = 'smem constant byte address 0x4 - core index']
  #allocation1 [shape = 'u32[144,128]{1,0:T(1,128)}', space=vmem, size = 0x12000, scoped, tag = 'internal scratch']
  %s0 = inlined_call_operand.vmem [shape: bf16[16,8,25], index: 0, kind: input, shape index: {}]
  %s1 = inlined_call_operand.vmem [shape: bf16[16,25,128], index: 1, kind: input, shape index: {}]
  %s2 = inlined_call_operand.vmem [shape: f32[1,128], index: 2, kind: input, shape index: {}]
  %s3 = inlined_call_operand.vmem [shape: bf16[128,128], index: 3, kind: input, shape index: {}]
  %s4 = inlined_call_operand.vmem [shape: f32[1,128], index: 4, kind: input, shape index: {}]
  %s5 = inlined_call_operand.vmem [shape: bf16[128,128], index: 5, kind: input, shape index: {}]
  %s6 = inlined_call_operand.vmem [shape: f32[1,128], index: 6, kind: input, shape index: {}]
  %s7 = inlined_call_operand.vmem [shape: f32[8,128], index: 7, kind: output, shape index: {}]
  %s8 = sld [smem:[#allocation0]]
  $region38: #{forward.5} parent=0
    _
  %s10 = ssub.s32 1, %s8
  %s11 = scalar_select 0, %s10, %s8
  // Predicated region
  $region2: #{forward.5} parent=0 // pred_check
    _
  $region3: #{forward.5} parent=0 // pred_check_branch
    %13 = sbr.rel (0) target = $region5
  $region4: #{forward.5} parent=0 // pred_region
    _
  $region5: #{forward.5} parent=0 // pred_fallthru
    _
  // Predicated region
  $region6: #{forward.5} parent=0 // pred_check
    _
  $region7: #{forward.5} parent=0 // pred_check_branch
    %15 = sbr.rel (0) target = $region9
  $region8: #{forward.5} parent=0 // pred_region
    _
  $region9: #{forward.5} parent=0 // pred_fallthru
    _
  // Predicated region
  $region10: #{forward.5} parent=0 // pred_check
    _
  $region11: #{forward.5} parent=0 // pred_check_branch
    %17 = sbr.rel (0) target = $region13
  $region12: #{forward.5} parent=0 // pred_region
    _
  $region13: #{forward.5} parent=0 // pred_fallthru
    _
  // Predicated region
  $region14: #{forward.5} parent=0 // pred_check
    _
  $region15: #{forward.5} parent=0 // pred_check_branch
    %19 = sbr.rel (0) target = $region17
  $region16: #{forward.5} parent=0 // pred_region
    _
  $region17: #{forward.5} parent=0 // pred_fallthru
    _
  // Predicated region
  $region18: #{forward.5} parent=0 // pred_check
    _
  $region19: #{forward.5} parent=0 // pred_check_branch
    %21 = sbr.rel (0) target = $region21
  $region20: #{forward.5} parent=0 // pred_region
    _
  $region21: #{forward.5} parent=0 // pred_fallthru
    _
  // Predicated region
  $region22: #{forward.5} parent=0 // pred_check
    _
  $region23: #{forward.5} parent=0 // pred_check_branch
    %23 = sbr.rel (0) target = $region25
  $region24: #{forward.5} parent=0 // pred_region
    _
  $region25: #{forward.5} parent=0 // pred_fallthru
    _
  // Predicated region
  $region26: #{forward.5} parent=0 // pred_check
    _
  $region27: #{forward.5} parent=0 // pred_check_branch
    %25 = sbr.rel (0) target = $region29
  $region28: #{forward.5} parent=0 // pred_region
    _
  $region29: #{forward.5} parent=0 // pred_fallthru
    _
  %v27 = vld [vmem:[%s0] sm:$0xf]
  %v28 = vld [vmem:[%s1] sm:$0xf]
  %v29 = vld [vmem:[%s1 + $0x4] sm:$0xf]
  %v30 = vld [vmem:[%s1 + $0x8] sm:$0xf]
  %v31 = vld [vmem:[%s1 + $0xc] sm:$0x1]
  %s32 = scalar_lea.vmem %s0, 4
  %v33 = vld [vmem:[%s32] sm:$0xf]
  %s34 = scalar_lea.vmem %s1, 16
  %v35 = vld [vmem:[%s34] sm:$0xf]
  %v36 = vld [vmem:[%s34 + $0x4] sm:$0xf]
  %v37 = vld [vmem:[%s34 + $0x8] sm:$0xf]
  %v38 = vld [vmem:[%s34 + $0xc] sm:$0x1]
  %v43 = vunpack.c.l.b16 %v35
  %v44 = vunpack.c.l.b16 %v36
  %v45 = vunpack.c.l.b16 %v37
  %v46 = vunpack.c.l.b16 %v38
  %v47 = vpack.c.b16 %v44, %v43
  %v48 = vpack.c.b16 %v46, %v45
  %vm50 = vcmask 203776
  %v52 = vsel %vm50, %v33, 0
  %vm54 = vcmask 1043456
  %vm55 = vcmask 1044480
  %v56 = vsel %vm54, 4294967295, 65535
  %v57 = vsel %vm55, %v56, 0
  %v59 = vand.u32 %v48, %v57
  %61 = vmatprep.subr.bf16.mxu0 0
  %62 = vmatpush1.bf16.msra.mxu0 %v47
  %63 = vmatprep.subr.bf16.mxu0 0
  %64 = vmatpush1.bf16.msra.mxu0 %v59
  %65 = vmatprep.subr.bf16.mxu0 0
  %66 = vmatpush1.bf16.msra.mxu0 0
  %67 = vmatprep.subr.bf16.mxu0 0
  %68 = vmatpush1.bf16.msra.mxu0 0
  %69 = vmatprep.subr.bf16.mxu0 0
  %70 = vmatpush1.bf16.msra.mxu0 0
  %71 = vmatprep.subr.bf16.mxu0 0
  %72 = vmatpush1.bf16.msra.mxu0 0
  %73 = vmatprep.subr.bf16.mxu0 0
  %74 = vmatpush1.bf16.msra.mxu0 0
  %75 = vmatprep.subr.bf16.mxu0 0
  %76 = vmatpush1.bf16.msra.mxu0 0
  %77 = vmatprep.subr.bf16.mxu0 0
  %78 = vmatpush1.bf16.msra.mxu0 0
  %79 = vmatprep.subr.bf16.mxu0 0
  %80 = vmatpush1.bf16.msra.mxu0 0
  %81 = vmatprep.subr.bf16.mxu0 0
  %82 = vmatpush1.bf16.msra.mxu0 0
  %83 = vmatprep.subr.bf16.mxu0 0
  %84 = vmatpush1.bf16.msra.mxu0 0
  %85 = vmatprep.subr.bf16.mxu0 0
  %86 = vmatpush1.bf16.msra.mxu0 0
  %87 = vmatprep.subr.bf16.mxu0 0
  %88 = vmatpush1.bf16.msra.mxu0 0
  %89 = vmatprep.subr.bf16.mxu0 0
  %90 = vmatpush1.bf16.msra.mxu0 0
  %91 = vmatprep.subr.bf16.mxu0 0
  %92 = vmatpush1.bf16.msra.mxu0 0
  %93 = vmatprep.mubr.bf16.mxu0 0
  %94 = vmatmul.mubr.bf16.gmra.mrb[0].mxu0 %v52
  %v95 = vpop.f32.mrb[0].mxu0
  %v96 = vadd.f32 0.0, %v95
  %v97 = vpop.f32.mrb[0].mxu0
  %v98 = vpop.f32.mrb[0].mxu0
  %v99 = vpop.f32.mrb[0].mxu0
  %100 = vdwg.mxu0
  %v105 = vunpack.c.l.b16 %v28
  %v106 = vunpack.c.l.b16 %v29
  %v107 = vunpack.c.l.b16 %v30
  %v108 = vunpack.c.l.b16 %v31
  %v109 = vpack.c.b16 %v106, %v105
  %v110 = vpack.c.b16 %v108, %v107
  %v113 = vsel %vm50, %v27, 0
  %v116 = vand.u32 %v110, %v57
  %118 = vmatprep.subr.bf16.mxu0 0
  %119 = vmatpush1.bf16.msra.mxu0 %v109
  %120 = vmatprep.subr.bf16.mxu0 0
  %121 = vmatpush1.bf16.msra.mxu0 %v116
  %122 = vmatprep.subr.bf16.mxu0 0
  %123 = vmatpush1.bf16.msra.mxu0 0
  %124 = vmatprep.subr.bf16.mxu0 0
  %125 = vmatpush1.bf16.msra.mxu0 0
  %126 = vmatprep.subr.bf16.mxu0 0
  %127 = vmatpush1.bf16.msra.mxu0 0
  %128 = vmatprep.subr.bf16.mxu0 0
  %129 = vmatpush1.bf16.msra.mxu0 0
  %130 = vmatprep.subr.bf16.mxu0 0
  %131 = vmatpush1.bf16.msra.mxu0 0
  %132 = vmatprep.subr.bf16.mxu0 0
  %133 = vmatpush1.bf16.msra.mxu0 0
  %134 = vmatprep.subr.bf16.mxu0 0
  %135 = vmatpush1.bf16.msra.mxu0 0
  %136 = vmatprep.subr.bf16.mxu0 0
  %137 = vmatpush1.bf16.msra.mxu0 0
  %138 = vmatprep.subr.bf16.mxu0 0
  %139 = vmatpush1.bf16.msra.mxu0 0
  %140 = vmatprep.subr.bf16.mxu0 0
  %141 = vmatpush1.bf16.msra.mxu0 0
  %142 = vmatprep.subr.bf16.mxu0 0
  %143 = vmatpush1.bf16.msra.mxu0 0
  %144 = vmatprep.subr.bf16.mxu0 0
  %145 = vmatpush1.bf16.msra.mxu0 0
  %146 = vmatprep.subr.bf16.mxu0 0
  %147 = vmatpush1.bf16.msra.mxu0 0
  %148 = vmatprep.subr.bf16.mxu0 0
  %149 = vmatpush1.bf16.msra.mxu0 0
  %150 = vmatprep.mubr.bf16.mxu0 0
  %151 = vmatmul.mubr.bf16.gmra.mrb[0].mxu0 %v113
  %v152 = vpop.f32.mrb[0].mxu0
  %v153 = vadd.f32 %v96, %v152
  %v154 = vpop.f32.mrb[0].mxu0
  %v155 = vpop.f32.mrb[0].mxu0
  %v156 = vpop.f32.mrb[0].mxu0
  %157 = vdwg.mxu0
  %s158 = scalar_lea.vmem %s0, 8
  %v159 = vld [vmem:[%s158] sm:$0xf]
  %s160 = scalar_lea.vmem %s1, 32
  %v161 = vld [vmem:[%s160] sm:$0xf]
  %v162 = vld [vmem:[%s160 + $0x4] sm:$0xf]
  %v163 = vld [vmem:[%s160 + $0x8] sm:$0xf]
  %v164 = vld [vmem:[%s160 + $0xc] sm:$0x1]
  %v169 = vunpack.c.l.b16 %v161
  %v170 = vunpack.c.l.b16 %v162
  %v171 = vunpack.c.l.b16 %v163
  %v172 = vunpack.c.l.b16 %v164
  %v173 = vpack.c.b16 %v170, %v169
  %v174 = vpack.c.b16 %v172, %v171
  %v177 = vsel %vm50, %v159, 0
  %v180 = vand.u32 %v174, %v57
  %182 = vmatprep.subr.bf16.mxu0 0
  %183 = vmatpush1.bf16.msra.mxu0 %v173
  %184 = vmatprep.subr.bf16.mxu0 0
  %185 = vmatpush1.bf16.msra.mxu0 %v180
  %186 = vmatprep.subr.bf16.mxu0 0
  %187 = vmatpush1.bf16.msra.mxu0 0
  %188 = vmatprep.subr.bf16.mxu0 0
  %189 = vmatpush1.bf16.msra.mxu0 0
  %190 = vmatprep.subr.bf16.mxu0 0
  %191 = vmatpush1.bf16.msra.mxu0 0
  %192 = vmatprep.subr.bf16.mxu0 0
  %193 = vmatpush1.bf16.msra.mxu0 0
  %194 = vmatprep.subr.bf16.mxu0 0
  %195 = vmatpush1.bf16.msra.mxu0 0
  %196 = vmatprep.subr.bf16.mxu0 0
  %197 = vmatpush1.bf16.msra.mxu0 0
  %198 = vmatprep.subr.bf16.mxu0 0
  %199 = vmatpush1.bf16.msra.mxu0 0
  %200 = vmatprep.subr.bf16.mxu0 0
  %201 = vmatpush1.bf16.msra.mxu0 0
  %202 = vmatprep.subr.bf16.mxu0 0
  %203 = vmatpush1.bf16.msra.mxu0 0
  %204 = vmatprep.subr.bf16.mxu0 0
  %205 = vmatpush1.bf16.msra.mxu0 0
  %206 = vmatprep.subr.bf16.mxu0 0
  %207 = vmatpush1.bf16.msra.mxu0 0
  %208 = vmatprep.subr.bf16.mxu0 0
  %209 = vmatpush1.bf16.msra.mxu0 0
  %210 = vmatprep.subr.bf16.mxu0 0
  %211 = vmatpush1.bf16.msra.mxu0 0
  %212 = vmatprep.subr.bf16.mxu0 0
  %213 = vmatpush1.bf16.msra.mxu0 0
  %214 = vmatprep.mubr.bf16.mxu0 0
  %215 = vmatmul.mubr.bf16.gmra.mrb[0].mxu0 %v177
  %v216 = vpop.f32.mrb[0].mxu0
  %v217 = vadd.f32 0.0, %v216
  %v218 = vpop.f32.mrb[0].mxu0
  %v219 = vpop.f32.mrb[0].mxu0
  %v220 = vpop.f32.mrb[0].mxu0
  %221 = vdwg.mxu0
  %v222 = vadd.f32 %v153, %v217
  %s223 = scalar_lea.vmem %s0, 12
  %v224 = vld [vmem:[%s223] sm:$0xf]
  %s225 = scalar_lea.vmem %s1, 48
  %v226 = vld [vmem:[%s225] sm:$0xf]
  %v227 = vld [vmem:[%s225 + $0x4] sm:$0xf]
  %v228 = vld [vmem:[%s225 + $0x8] sm:$0xf]
  %v229 = vld [vmem:[%s225 + $0xc] sm:$0x1]
  %v234 = vunpack.c.l.b16 %v226
  %v235 = vunpack.c.l.b16 %v227
  %v236 = vunpack.c.l.b16 %v228
  %v237 = vunpack.c.l.b16 %v229
  %v238 = vpack.c.b16 %v235, %v234
  %v239 = vpack.c.b16 %v237, %v236
  %v242 = vsel %vm50, %v224, 0
  %v245 = vand.u32 %v239, %v57
  %247 = vmatprep.subr.bf16.mxu0 0
  %248 = vmatpush1.bf16.msra.mxu0 %v238
  %249 = vmatprep.subr.bf16.mxu0 0
  %250 = vmatpush1.bf16.msra.mxu0 %v245
  %251 = vmatprep.subr.bf16.mxu0 0
  %252 = vmatpush1.bf16.msra.mxu0 0
  %253 = vmatprep.subr.bf16.mxu0 0
  %254 = vmatpush1.bf16.msra.mxu0 0
  %255 = vmatprep.subr.bf16.mxu0 0
  %256 = vmatpush1.bf16.msra.mxu0 0
  %257 = vmatprep.subr.bf16.mxu0 0
  %258 = vmatpush1.bf16.msra.mxu0 0
  %259 = vmatprep.subr.bf16.mxu0 0
  %260 = vmatpush1.bf16.msra.mxu0 0
  %261 = vmatprep.subr.bf16.mxu0 0
  %262 = vmatpush1.bf16.msra.mxu0 0
  %263 = vmatprep.subr.bf16.mxu0 0
  %264 = vmatpush1.bf16.msra.mxu0 0
  %265 = vmatprep.subr.bf16.mxu0 0
  %266 = vmatpush1.bf16.msra.mxu0 0
  %267 = vmatprep.subr.bf16.mxu0 0
  %268 = vmatpush1.bf16.msra.mxu0 0
  %269 = vmatprep.subr.bf16.mxu0 0
  %270 = vmatpush1.bf16.msra.mxu0 0
  %271 = vmatprep.subr.bf16.mxu0 0
  %272 = vmatpush1.bf16.msra.mxu0 0
  %273 = vmatprep.subr.bf16.mxu0 0
  %274 = vmatpush1.bf16.msra.mxu0 0
  %275 = vmatprep.subr.bf16.mxu0 0
  %276 = vmatpush1.bf16.msra.mxu0 0
  %277 = vmatprep.subr.bf16.mxu0 0
  %278 = vmatpush1.bf16.msra.mxu0 0
  %279 = vmatprep.mubr.bf16.mxu0 0
  %280 = vmatmul.mubr.bf16.gmra.mrb[0].mxu0 %v242
  %v281 = vpop.f32.mrb[0].mxu0
  %v282 = vadd.f32 0.0, %v281
  %v283 = vpop.f32.mrb[0].mxu0
  %v284 = vpop.f32.mrb[0].mxu0
  %v285 = vpop.f32.mrb[0].mxu0
  %286 = vdwg.mxu0
  %v287 = vadd.f32 %v222, %v282
  %s288 = scalar_lea.vmem %s0, 16
  %v289 = vld [vmem:[%s288] sm:$0xf]
  %s290 = scalar_lea.vmem %s1, 64
  %v291 = vld [vmem:[%s290] sm:$0xf]
  %v292 = vld [vmem:[%s290 + $0x4] sm:$0xf]
  %v293 = vld [vmem:[%s290 + $0x8] sm:$0xf]
  %v294 = vld [vmem:[%s290 + $0xc] sm:$0x1]
  %v299 = vunpack.c.l.b16 %v291
  %v300 = vunpack.c.l.b16 %v292
  %v301 = vunpack.c.l.b16 %v293
  %v302 = vunpack.c.l.b16 %v294
  %v303 = vpack.c.b16 %v300, %v299
  %v304 = vpack.c.b16 %v302, %v301
  %v307 = vsel %vm50, %v289, 0
  %v310 = vand.u32 %v304, %v57
  %312 = vmatprep.subr.bf16.mxu0 0
  %313 = vmatpush1.bf16.msra.mxu0 %v303
  %314 = vmatprep.subr.bf16.mxu0 0
  %315 = vmatpush1.bf16.msra.mxu0 %v310
  %316 = vmatprep.subr.bf16.mxu0 0
  %317 = vmatpush1.bf16.msra.mxu0 0
  %318 = vmatprep.subr.bf16.mxu0 0
  %319 = vmatpush1.bf16.msra.mxu0 0
  %320 = vmatprep.subr.bf16.mxu0 0
  %321 = vmatpush1.bf16.msra.mxu0 0
  %322 = vmatprep.subr.bf16.mxu0 0
  %323 = vmatpush1.bf16.msra.mxu0 0
  %324 = vmatprep.subr.bf16.mxu0 0
  %325 = vmatpush1.bf16.msra.mxu0 0
  %326 = vmatprep.subr.bf16.mxu0 0
  %327 = vmatpush1.bf16.msra.mxu0 0
  %328 = vmatprep.subr.bf16.mxu0 0
  %329 = vmatpush1.bf16.msra.mxu0 0
  %330 = vmatprep.subr.bf16.mxu0 0
  %331 = vmatpush1.bf16.msra.mxu0 0
  %332 = vmatprep.subr.bf16.mxu0 0
  %333 = vmatpush1.bf16.msra.mxu0 0
  %334 = vmatprep.subr.bf16.mxu0 0
  %335 = vmatpush1.bf16.msra.mxu0 0
  %336 = vmatprep.subr.bf16.mxu0 0
  %337 = vmatpush1.bf16.msra.mxu0 0
  %338 = vmatprep.subr.bf16.mxu0 0
  %339 = vmatpush1.bf16.msra.mxu0 0
  %340 = vmatprep.subr.bf16.mxu0 0
  %341 = vmatpush1.bf16.msra.mxu0 0
  %342 = vmatprep.subr.bf16.mxu0 0
  %343 = vmatpush1.bf16.msra.mxu0 0
  %344 = vmatprep.mubr.bf16.mxu0 0
  %345 = vmatmul.mubr.bf16.gmra.mrb[0].mxu0 %v307
  %v346 = vpop.f32.mrb[0].mxu0
  %v347 = vadd.f32 0.0, %v346
  %v348 = vpop.f32.mrb[0].mxu0
  %v349 = vpop.f32.mrb[0].mxu0
  %v350 = vpop.f32.mrb[0].mxu0
  %351 = vdwg.mxu0
  %v352 = vadd.f32 %v287, %v347
  %s353 = scalar_lea.vmem %s0, 20
  %v354 = vld [vmem:[%s353] sm:$0xf]
  %s355 = scalar_lea.vmem %s1, 80
  %v356 = vld [vmem:[%s355] sm:$0xf]
  %v357 = vld [vmem:[%s355 + $0x4] sm:$0xf]
  %v358 = vld [vmem:[%s355 + $0x8] sm:$0xf]
  %v359 = vld [vmem:[%s355 + $0xc] sm:$0x1]
  %v364 = vunpack.c.l.b16 %v356
  %v365 = vunpack.c.l.b16 %v357
  %v366 = vunpack.c.l.b16 %v358
  %v367 = vunpack.c.l.b16 %v359
  %v368 = vpack.c.b16 %v365, %v364
  %v369 = vpack.c.b16 %v367, %v366
  %v372 = vsel %vm50, %v354, 0
  %v375 = vand.u32 %v369, %v57
  %377 = vmatprep.subr.bf16.mxu0 0
  %378 = vmatpush1.bf16.msra.mxu0 %v368
  %379 = vmatprep.subr.bf16.mxu0 0
  %380 = vmatpush1.bf16.msra.mxu0 %v375
  %381 = vmatprep.subr.bf16.mxu0 0
  %382 = vmatpush1.bf16.msra.mxu0 0
  %383 = vmatprep.subr.bf16.mxu0 0
  %384 = vmatpush1.bf16.msra.mxu0 0
  %385 = vmatprep.subr.bf16.mxu0 0
  %386 = vmatpush1.bf16.msra.mxu0 0
  %387 = vmatprep.subr.bf16.mxu0 0
  %388 = vmatpush1.bf16.msra.mxu0 0
  %389 = vmatprep.subr.bf16.mxu0 0
  %390 = vmatpush1.bf16.msra.mxu0 0
  %391 = vmatprep.subr.bf16.mxu0 0
  %392 = vmatpush1.bf16.msra.mxu0 0
  %393 = vmatprep.subr.bf16.mxu0 0
  %394 = vmatpush1.bf16.msra.mxu0 0
  %395 = vmatprep.subr.bf16.mxu0 0
  %396 = vmatpush1.bf16.msra.mxu0 0
  %397 = vmatprep.subr.bf16.mxu0 0
  %398 = vmatpush1.bf16.msra.mxu0 0
  %399 = vmatprep.subr.bf16.mxu0 0
  %400 = vmatpush1.bf16.msra.mxu0 0
  %401 = vmatprep.subr.bf16.mxu0 0
  %402 = vmatpush1.bf16.msra.mxu0 0
  %403 = vmatprep.subr.bf16.mxu0 0
  %404 = vmatpush1.bf16.msra.mxu0 0
  %405 = vmatprep.subr.bf16.mxu0 0
  %406 = vmatpush1.bf16.msra.mxu0 0
  %407 = vmatprep.subr.bf16.mxu0 0
  %408 = vmatpush1.bf16.msra.mxu0 0
  %409 = vmatprep.mubr.bf16.mxu0 0
  %410 = vmatmul.mubr.bf16.gmra.mrb[0].mxu0 %v372
  %v411 = vpop.f32.mrb[0].mxu0
  %v412 = vadd.f32 0.0, %v411
  %v413 = vpop.f32.mrb[0].mxu0
  %v414 = vpop.f32.mrb[0].mxu0
  %v415 = vpop.f32.mrb[0].mxu0
  %416 = vdwg.mxu0
  %v417 = vadd.f32 %v352, %v412
  %s418 = scalar_lea.vmem %s0, 24
  %v419 = vld [vmem:[%s418] sm:$0xf]
  %s420 = scalar_lea.vmem %s1, 96
  %v421 = vld [vmem:[%s420] sm:$0xf]
  %v422 = vld [vmem:[%s420 + $0x4] sm:$0xf]
  %v423 = vld [vmem:[%s420 + $0x8] sm:$0xf]
  %v424 = vld [vmem:[%s420 + $0xc] sm:$0x1]
  %v429 = vunpack.c.l.b16 %v421
  %v430 = vunpack.c.l.b16 %v422
  %v431 = vunpack.c.l.b16 %v423
  %v432 = vunpack.c.l.b16 %v424
  %v433 = vpack.c.b16 %v430, %v429
  %v434 = vpack.c.b16 %v432, %v431
  %v437 = vsel %vm50, %v419, 0
  %v440 = vand.u32 %v434, %v57
  %442 = vmatprep.subr.bf16.mxu0 0
  %443 = vmatpush1.bf16.msra.mxu0 %v433
  %444 = vmatprep.subr.bf16.mxu0 0
  %445 = vmatpush1.bf16.msra.mxu0 %v440
  %446 = vmatprep.subr.bf16.mxu0 0
  %447 = vmatpush1.bf16.msra.mxu0 0
  %448 = vmatprep.subr.bf16.mxu0 0
  %449 = vmatpush1.bf16.msra.mxu0 0
  %450 = vmatprep.subr.bf16.mxu0 0
  %451 = vmatpush1.bf16.msra.mxu0 0
  %452 = vmatprep.subr.bf16.mxu0 0
  %453 = vmatpush1.bf16.msra.mxu0 0
  %454 = vmatprep.subr.bf16.mxu0 0
  %455 = vmatpush1.bf16.msra.mxu0 0
  %456 = vmatprep.subr.bf16.mxu0 0
  %457 = vmatpush1.bf16.msra.mxu0 0
  %458 = vmatprep.subr.bf16.mxu0 0
  %459 = vmatpush1.bf16.msra.mxu0 0
  %460 = vmatprep.subr.bf16.mxu0 0
  %461 = vmatpush1.bf16.msra.mxu0 0
  %462 = vmatprep.subr.bf16.mxu0 0
  %463 = vmatpush1.bf16.msra.mxu0 0
  %464 = vmatprep.subr.bf16.mxu0 0
  %465 = vmatpush1.bf16.msra.mxu0 0
  %466 = vmatprep.subr.bf16.mxu0 0
  %467 = vmatpush1.bf16.msra.mxu0 0
  %468 = vmatprep.subr.bf16.mxu0 0
  %469 = vmatpush1.bf16.msra.mxu0 0
  %470 = vmatprep.subr.bf16.mxu0 0
  %471 = vmatpush1.bf16.msra.mxu0 0
  %472 = vmatprep.subr.bf16.mxu0 0
  %473 = vmatpush1.bf16.msra.mxu0 0
  %474 = vmatprep.mubr.bf16.mxu0 0
  %475 = vmatmul.mubr.bf16.gmra.mrb[0].mxu0 %v437
  %v476 = vpop.f32.mrb[0].mxu0
  %v477 = vadd.f32 0.0, %v476
  %v478 = vpop.f32.mrb[0].mxu0
  %v479 = vpop.f32.mrb[0].mxu0
  %v480 = vpop.f32.mrb[0].mxu0
  %481 = vdwg.mxu0
  %v482 = vadd.f32 %v417, %v477
  %s483 = scalar_lea.vmem %s0, 28
  %v484 = vld [vmem:[%s483] sm:$0xf]
  %s485 = scalar_lea.vmem %s1, 112
  %v486 = vld [vmem:[%s485] sm:$0xf]
  %v487 = vld [vmem:[%s485 + $0x4] sm:$0xf]
  %v488 = vld [vmem:[%s485 + $0x8] sm:$0xf]
  %v489 = vld [vmem:[%s485 + $0xc] sm:$0x1]
  %v494 = vunpack.c.l.b16 %v486
  %v495 = vunpack.c.l.b16 %v487
  %v496 = vunpack.c.l.b16 %v488
  %v497 = vunpack.c.l.b16 %v489
  %v498 = vpack.c.b16 %v495, %v494
  %v499 = vpack.c.b16 %v497, %v496
  %v502 = vsel %vm50, %v484, 0
  %v505 = vand.u32 %v499, %v57
  %507 = vmatprep.subr.bf16.mxu0 0
  %508 = vmatpush1.bf16.msra.mxu0 %v498
  %509 = vmatprep.subr.bf16.mxu0 0
  %510 = vmatpush1.bf16.msra.mxu0 %v505
  %511 = vmatprep.subr.bf16.mxu0 0
  %512 = vmatpush1.bf16.msra.mxu0 0
  %513 = vmatprep.subr.bf16.mxu0 0
  %514 = vmatpush1.bf16.msra.mxu0 0
  %515 = vmatprep.subr.bf16.mxu0 0
  %516 = vmatpush1.bf16.msra.mxu0 0
  %517 = vmatprep.subr.bf16.mxu0 0
  %518 = vmatpush1.bf16.msra.mxu0 0
  %519 = vmatprep.subr.bf16.mxu0 0
  %520 = vmatpush1.bf16.msra.mxu0 0
  %521 = vmatprep.subr.bf16.mxu0 0
  %522 = vmatpush1.bf16.msra.mxu0 0
  %523 = vmatprep.subr.bf16.mxu0 0
  %524 = vmatpush1.bf16.msra.mxu0 0
  %525 = vmatprep.subr.bf16.mxu0 0
  %526 = vmatpush1.bf16.msra.mxu0 0
  %527 = vmatprep.subr.bf16.mxu0 0
  %528 = vmatpush1.bf16.msra.mxu0 0
  %529 = vmatprep.subr.bf16.mxu0 0
  %530 = vmatpush1.bf16.msra.mxu0 0
  %531 = vmatprep.subr.bf16.mxu0 0
  %532 = vmatpush1.bf16.msra.mxu0 0
  %533 = vmatprep.subr.bf16.mxu0 0
  %534 = vmatpush1.bf16.msra.mxu0 0
  %535 = vmatprep.subr.bf16.mxu0 0
  %536 = vmatpush1.bf16.msra.mxu0 0
  %537 = vmatprep.subr.bf16.mxu0 0
  %538 = vmatpush1.bf16.msra.mxu0 0
  %539 = vmatprep.mubr.bf16.mxu0 0
  %540 = vmatmul.mubr.bf16.gmra.mrb[0].mxu0 %v502
  %v541 = vpop.f32.mrb[0].mxu0
  %v542 = vadd.f32 0.0, %v541
  %v543 = vpop.f32.mrb[0].mxu0
  %v544 = vpop.f32.mrb[0].mxu0
  %v545 = vpop.f32.mrb[0].mxu0
  %546 = vdwg.mxu0
  %v547 = vadd.f32 %v482, %v542
  %s548 = scalar_lea.vmem %s0, 32
  %v549 = vld [vmem:[%s548] sm:$0xf]
  %s550 = scalar_lea.vmem %s1, 128
  %v551 = vld [vmem:[%s550] sm:$0xf]
  %v552 = vld [vmem:[%s550 + $0x4] sm:$0xf]
  %v553 = vld [vmem:[%s550 + $0x8] sm:$0xf]
  %v554 = vld [vmem:[%s550 + $0xc] sm:$0x1]
  %v559 = vunpack.c.l.b16 %v551
  %v560 = vunpack.c.l.b16 %v552
  %v561 = vunpack.c.l.b16 %v553
  %v562 = vunpack.c.l.b16 %v554
  %v563 = vpack.c.b16 %v560, %v559
  %v564 = vpack.c.b16 %v562, %v561
  %v567 = vsel %vm50, %v549, 0
  %v570 = vand.u32 %v564, %v57
  %572 = vmatprep.subr.bf16.mxu0 0
  %573 = vmatpush1.bf16.msra.mxu0 %v563
  %574 = vmatprep.subr.bf16.mxu0 0
  %575 = vmatpush1.bf16.msra.mxu0 %v570
  %576 = vmatprep.subr.bf16.mxu0 0
  %577 = vmatpush1.bf16.msra.mxu0 0
  %578 = vmatprep.subr.bf16.mxu0 0
  %579 = vmatpush1.bf16.msra.mxu0 0
  %580 = vmatprep.subr.bf16.mxu0 0
  %581 = vmatpush1.bf16.msra.mxu0 0
  %582 = vmatprep.subr.bf16.mxu0 0
  %583 = vmatpush1.bf16.msra.mxu0 0
  %584 = vmatprep.subr.bf16.mxu0 0
  %585 = vmatpush1.bf16.msra.mxu0 0
  %586 = vmatprep.subr.bf16.mxu0 0
  %587 = vmatpush1.bf16.msra.mxu0 0
  %588 = vmatprep.subr.bf16.mxu0 0
  %589 = vmatpush1.bf16.msra.mxu0 0
  %590 = vmatprep.subr.bf16.mxu0 0
  %591 = vmatpush1.bf16.msra.mxu0 0
  %592 = vmatprep.subr.bf16.mxu0 0
  %593 = vmatpush1.bf16.msra.mxu0 0
  %594 = vmatprep.subr.bf16.mxu0 0
  %595 = vmatpush1.bf16.msra.mxu0 0
  %596 = vmatprep.subr.bf16.mxu0 0
  %597 = vmatpush1.bf16.msra.mxu0 0
  %598 = vmatprep.subr.bf16.mxu0 0
  %599 = vmatpush1.bf16.msra.mxu0 0
  %600 = vmatprep.subr.bf16.mxu0 0
  %601 = vmatpush1.bf16.msra.mxu0 0
  %602 = vmatprep.subr.bf16.mxu0 0
  %603 = vmatpush1.bf16.msra.mxu0 0
  %604 = vmatprep.mubr.bf16.mxu0 0
  %605 = vmatmul.mubr.bf16.gmra.mrb[0].mxu0 %v567
  %v606 = vpop.f32.mrb[0].mxu0
  %v607 = vadd.f32 0.0, %v606
  %v608 = vpop.f32.mrb[0].mxu0
  %v609 = vpop.f32.mrb[0].mxu0
  %v610 = vpop.f32.mrb[0].mxu0
  %611 = vdwg.mxu0
  %v612 = vadd.f32 %v547, %v607
  %s613 = scalar_lea.vmem %s0, 36
  %v614 = vld [vmem:[%s613] sm:$0xf]
  %s615 = scalar_lea.vmem %s1, 144
  %v616 = vld [vmem:[%s615] sm:$0xf]
  %v617 = vld [vmem:[%s615 + $0x4] sm:$0xf]
  %v618 = vld [vmem:[%s615 + $0x8] sm:$0xf]
  %v619 = vld [vmem:[%s615 + $0xc] sm:$0x1]
  %v624 = vunpack.c.l.b16 %v616
  %v625 = vunpack.c.l.b16 %v617
  %v626 = vunpack.c.l.b16 %v618
  %v627 = vunpack.c.l.b16 %v619
  %v628 = vpack.c.b16 %v625, %v624
  %v629 = vpack.c.b16 %v627, %v626
  %v632 = vsel %vm50, %v614, 0
  %v635 = vand.u32 %v629, %v57
  %637 = vmatprep.subr.bf16.mxu0 0
  %638 = vmatpush1.bf16.msra.mxu0 %v628
  %639 = vmatprep.subr.bf16.mxu0 0
  %640 = vmatpush1.bf16.msra.mxu0 %v635
  %641 = vmatprep.subr.bf16.mxu0 0
  %642 = vmatpush1.bf16.msra.mxu0 0
  %643 = vmatprep.subr.bf16.mxu0 0
  %644 = vmatpush1.bf16.msra.mxu0 0
  %645 = vmatprep.subr.bf16.mxu0 0
  %646 = vmatpush1.bf16.msra.mxu0 0
  %647 = vmatprep.subr.bf16.mxu0 0
  %648 = vmatpush1.bf16.msra.mxu0 0
  %649 = vmatprep.subr.bf16.mxu0 0
  %650 = vmatpush1.bf16.msra.mxu0 0
  %651 = vmatprep.subr.bf16.mxu0 0
  %652 = vmatpush1.bf16.msra.mxu0 0
  %653 = vmatprep.subr.bf16.mxu0 0
  %654 = vmatpush1.bf16.msra.mxu0 0
  %655 = vmatprep.subr.bf16.mxu0 0
  %656 = vmatpush1.bf16.msra.mxu0 0
  %657 = vmatprep.subr.bf16.mxu0 0
  %658 = vmatpush1.bf16.msra.mxu0 0
  %659 = vmatprep.subr.bf16.mxu0 0
  %660 = vmatpush1.bf16.msra.mxu0 0
  %661 = vmatprep.subr.bf16.mxu0 0
  %662 = vmatpush1.bf16.msra.mxu0 0
  %663 = vmatprep.subr.bf16.mxu0 0
  %664 = vmatpush1.bf16.msra.mxu0 0
  %665 = vmatprep.subr.bf16.mxu0 0
  %666 = vmatpush1.bf16.msra.mxu0 0
  %667 = vmatprep.subr.bf16.mxu0 0
  %668 = vmatpush1.bf16.msra.mxu0 0
  %669 = vmatprep.mubr.bf16.mxu0 0
  %670 = vmatmul.mubr.bf16.gmra.mrb[0].mxu0 %v632
  %v671 = vpop.f32.mrb[0].mxu0
  %v672 = vadd.f32 0.0, %v671
  %v673 = vpop.f32.mrb[0].mxu0
  %v674 = vpop.f32.mrb[0].mxu0
  %v675 = vpop.f32.mrb[0].mxu0
  %676 = vdwg.mxu0
  %v677 = vadd.f32 %v612, %v672
  %s678 = scalar_lea.vmem %s0, 40
  %v679 = vld [vmem:[%s678] sm:$0xf]
  %s680 = scalar_lea.vmem %s1, 160
  %v681 = vld [vmem:[%s680] sm:$0xf]
  %v682 = vld [vmem:[%s680 + $0x4] sm:$0xf]
  %v683 = vld [vmem:[%s680 + $0x8] sm:$0xf]
  %v684 = vld [vmem:[%s680 + $0xc] sm:$0x1]
  %v689 = vunpack.c.l.b16 %v681
  %v690 = vunpack.c.l.b16 %v682
  %v691 = vunpack.c.l.b16 %v683
  %v692 = vunpack.c.l.b16 %v684
  %v693 = vpack.c.b16 %v690, %v689
  %v694 = vpack.c.b16 %v692, %v691
  %v697 = vsel %vm50, %v679, 0
  %v700 = vand.u32 %v694, %v57
  %702 = vmatprep.subr.bf16.mxu0 0
  %703 = vmatpush1.bf16.msra.mxu0 %v693
  %704 = vmatprep.subr.bf16.mxu0 0
  %705 = vmatpush1.bf16.msra.mxu0 %v700
  %706 = vmatprep.subr.bf16.mxu0 0
  %707 = vmatpush1.bf16.msra.mxu0 0
  %708 = vmatprep.subr.bf16.mxu0 0
  %709 = vmatpush1.bf16.msra.mxu0 0
  %710 = vmatprep.subr.bf16.mxu0 0
  %711 = vmatpush1.bf16.msra.mxu0 0
  %712 = vmatprep.subr.bf16.mxu0 0
  %713 = vmatpush1.bf16.msra.mxu0 0
  %714 = vmatprep.subr.bf16.mxu0 0
  %715 = vmatpush1.bf16.msra.mxu0 0
  %716 = vmatprep.subr.bf16.mxu0 0
  %717 = vmatpush1.bf16.msra.mxu0 0
  %718 = vmatprep.subr.bf16.mxu0 0
  %719 = vmatpush1.bf16.msra.mxu0 0
  %720 = vmatprep.subr.bf16.mxu0 0
  %721 = vmatpush1.bf16.msra.mxu0 0
  %722 = vmatprep.subr.bf16.mxu0 0
  %723 = vmatpush1.bf16.msra.mxu0 0
  %724 = vmatprep.subr.bf16.mxu0 0
  %725 = vmatpush1.bf16.msra.mxu0 0
  %726 = vmatprep.subr.bf16.mxu0 0
  %727 = vmatpush1.bf16.msra.mxu0 0
  %728 = vmatprep.subr.bf16.mxu0 0
  %729 = vmatpush1.bf16.msra.mxu0 0
  %730 = vmatprep.subr.bf16.mxu0 0
  %731 = vmatpush1.bf16.msra.mxu0 0
  %732 = vmatprep.subr.bf16.mxu0 0
  %733 = vmatpush1.bf16.msra.mxu0 0
  %734 = vmatprep.mubr.bf16.mxu0 0
  %735 = vmatmul.mubr.bf16.gmra.mrb[0].mxu0 %v697
  %v736 = vpop.f32.mrb[0].mxu0
  %v737 = vadd.f32 0.0, %v736
  %v738 = vpop.f32.mrb[0].mxu0
  %v739 = vpop.f32.mrb[0].mxu0
  %v740 = vpop.f32.mrb[0].mxu0
  %741 = vdwg.mxu0
  %v742 = vadd.f32 %v677, %v737
  %s743 = scalar_lea.vmem %s0, 44
  %v744 = vld [vmem:[%s743] sm:$0xf]
  %s745 = scalar_lea.vmem %s1, 176
  %v746 = vld [vmem:[%s745] sm:$0xf]
  %v747 = vld [vmem:[%s745 + $0x4] sm:$0xf]
  %v748 = vld [vmem:[%s745 + $0x8] sm:$0xf]
  %v749 = vld [vmem:[%s745 + $0xc] sm:$0x1]
  %v754 = vunpack.c.l.b16 %v746
  %v755 = vunpack.c.l.b16 %v747
  %v756 = vunpack.c.l.b16 %v748
  %v757 = vunpack.c.l.b16 %v749
  %v758 = vpack.c.b16 %v755, %v754
  %v759 = vpack.c.b16 %v757, %v756
  %v762 = vsel %vm50, %v744, 0
  %v765 = vand.u32 %v759, %v57
  %767 = vmatprep.subr.bf16.mxu0 0
  %768 = vmatpush1.bf16.msra.mxu0 %v758
  %769 = vmatprep.subr.bf16.mxu0 0
  %770 = vmatpush1.bf16.msra.mxu0 %v765
  %771 = vmatprep.subr.bf16.mxu0 0
  %772 = vmatpush1.bf16.msra.mxu0 0
  %773 = vmatprep.subr.bf16.mxu0 0
  %774 = vmatpush1.bf16.msra.mxu0 0
  %775 = vmatprep.subr.bf16.mxu0 0
  %776 = vmatpush1.bf16.msra.mxu0 0
  %777 = vmatprep.subr.bf16.mxu0 0
  %778 = vmatpush1.bf16.msra.mxu0 0
  %779 = vmatprep.subr.bf16.mxu0 0
  %780 = vmatpush1.bf16.msra.mxu0 0
  %781 = vmatprep.subr.bf16.mxu0 0
  %782 = vmatpush1.bf16.msra.mxu0 0
  %783 = vmatprep.subr.bf16.mxu0 0
  %784 = vmatpush1.bf16.msra.mxu0 0
  %785 = vmatprep.subr.bf16.mxu0 0
  %786 = vmatpush1.bf16.msra.mxu0 0
  %787 = vmatprep.subr.bf16.mxu0 0
  %788 = vmatpush1.bf16.msra.mxu0 0
  %789 = vmatprep.subr.bf16.mxu0 0
  %790 = vmatpush1.bf16.msra.mxu0 0
  %791 = vmatprep.subr.bf16.mxu0 0
  %792 = vmatpush1.bf16.msra.mxu0 0
  %793 = vmatprep.subr.bf16.mxu0 0
  %794 = vmatpush1.bf16.msra.mxu0 0
  %795 = vmatprep.subr.bf16.mxu0 0
  %796 = vmatpush1.bf16.msra.mxu0 0
  %797 = vmatprep.subr.bf16.mxu0 0
  %798 = vmatpush1.bf16.msra.mxu0 0
  %799 = vmatprep.mubr.bf16.mxu0 0
  %800 = vmatmul.mubr.bf16.gmra.mrb[0].mxu0 %v762
  %v801 = vpop.f32.mrb[0].mxu0
  %v802 = vadd.f32 0.0, %v801
  %v803 = vpop.f32.mrb[0].mxu0
  %v804 = vpop.f32.mrb[0].mxu0
  %v805 = vpop.f32.mrb[0].mxu0
  %806 = vdwg.mxu0
  %v807 = vadd.f32 %v742, %v802
  %s808 = scalar_lea.vmem %s0, 48
  %v809 = vld [vmem:[%s808] sm:$0xf]
  %s810 = scalar_lea.vmem %s1, 192
  %v811 = vld [vmem:[%s810] sm:$0xf]
  %v812 = vld [vmem:[%s810 + $0x4] sm:$0xf]
  %v813 = vld [vmem:[%s810 + $0x8] sm:$0xf]
  %v814 = vld [vmem:[%s810 + $0xc] sm:$0x1]
  %v819 = vunpack.c.l.b16 %v811
  %v820 = vunpack.c.l.b16 %v812
  %v821 = vunpack.c.l.b16 %v813
  %v822 = vunpack.c.l.b16 %v814
  %v823 = vpack.c.b16 %v820, %v819
  %v824 = vpack.c.b16 %v822, %v821
  %v827 = vsel %vm50, %v809, 0
  %v830 = vand.u32 %v824, %v57
  %832 = vmatprep.subr.bf16.mxu0 0
  %833 = vmatpush1.bf16.msra.mxu0 %v823
  %834 = vmatprep.subr.bf16.mxu0 0
  %835 = vmatpush1.bf16.msra.mxu0 %v830
  %836 = vmatprep.subr.bf16.mxu0 0
  %837 = vmatpush1.bf16.msra.mxu0 0
  %838 = vmatprep.subr.bf16.mxu0 0
  %839 = vmatpush1.bf16.msra.mxu0 0
  %840 = vmatprep.subr.bf16.mxu0 0
  %841 = vmatpush1.bf16.msra.mxu0 0
  %842 = vmatprep.subr.bf16.mxu0 0
  %843 = vmatpush1.bf16.msra.mxu0 0
  %844 = vmatprep.subr.bf16.mxu0 0
  %845 = vmatpush1.bf16.msra.mxu0 0
  %846 = vmatprep.subr.bf16.mxu0 0
  %847 = vmatpush1.bf16.msra.mxu0 0
  %848 = vmatprep.subr.bf16.mxu0 0
  %849 = vmatpush1.bf16.msra.mxu0 0
  %850 = vmatprep.subr.bf16.mxu0 0
  %851 = vmatpush1.bf16.msra.mxu0 0
  %852 = vmatprep.subr.bf16.mxu0 0
  %853 = vmatpush1.bf16.msra.mxu0 0
  %854 = vmatprep.subr.bf16.mxu0 0
  %855 = vmatpush1.bf16.msra.mxu0 0
  %856 = vmatprep.subr.bf16.mxu0 0
  %857 = vmatpush1.bf16.msra.mxu0 0
  %858 = vmatprep.subr.bf16.mxu0 0
  %859 = vmatpush1.bf16.msra.mxu0 0
  %860 = vmatprep.subr.bf16.mxu0 0
  %861 = vmatpush1.bf16.msra.mxu0 0
  %862 = vmatprep.subr.bf16.mxu0 0
  %863 = vmatpush1.bf16.msra.mxu0 0
  %864 = vmatprep.mubr.bf16.mxu0 0
  %865 = vmatmul.mubr.bf16.gmra.mrb[0].mxu0 %v827
  %v866 = vpop.f32.mrb[0].mxu0
  %v867 = vadd.f32 0.0, %v866
  %v868 = vpop.f32.mrb[0].mxu0
  %v869 = vpop.f32.mrb[0].mxu0
  %v870 = vpop.f32.mrb[0].mxu0
  %871 = vdwg.mxu0
  %v872 = vadd.f32 %v807, %v867
  %s873 = scalar_lea.vmem %s0, 52
  %v874 = vld [vmem:[%s873] sm:$0xf]
  %s875 = scalar_lea.vmem %s1, 208
  %v876 = vld [vmem:[%s875] sm:$0xf]
  %v877 = vld [vmem:[%s875 + $0x4] sm:$0xf]
  %v878 = vld [vmem:[%s875 + $0x8] sm:$0xf]
  %v879 = vld [vmem:[%s875 + $0xc] sm:$0x1]
  %v884 = vunpack.c.l.b16 %v876
  %v885 = vunpack.c.l.b16 %v877
  %v886 = vunpack.c.l.b16 %v878
  %v887 = vunpack.c.l.b16 %v879
  %v888 = vpack.c.b16 %v885, %v884
  %v889 = vpack.c.b16 %v887, %v886
  %v892 = vsel %vm50, %v874, 0
  %v895 = vand.u32 %v889, %v57
  %897 = vmatprep.subr.bf16.mxu0 0
  %898 = vmatpush1.bf16.msra.mxu0 %v888
  %899 = vmatprep.subr.bf16.mxu0 0
  %900 = vmatpush1.bf16.msra.mxu0 %v895
  %901 = vmatprep.subr.bf16.mxu0 0
  %902 = vmatpush1.bf16.msra.mxu0 0
  %903 = vmatprep.subr.bf16.mxu0 0
  %904 = vmatpush1.bf16.msra.mxu0 0
  %905 = vmatprep.subr.bf16.mxu0 0
  %906 = vmatpush1.bf16.msra.mxu0 0
  %907 = vmatprep.subr.bf16.mxu0 0
  %908 = vmatpush1.bf16.msra.mxu0 0
  %909 = vmatprep.subr.bf16.mxu0 0
  %910 = vmatpush1.bf16.msra.mxu0 0
  %911 = vmatprep.subr.bf16.mxu0 0
  %912 = vmatpush1.bf16.msra.mxu0 0
  %913 = vmatprep.subr.bf16.mxu0 0
  %914 = vmatpush1.bf16.msra.mxu0 0
  %915 = vmatprep.subr.bf16.mxu0 0
  %916 = vmatpush1.bf16.msra.mxu0 0
  %917 = vmatprep.subr.bf16.mxu0 0
  %918 = vmatpush1.bf16.msra.mxu0 0
  %919 = vmatprep.subr.bf16.mxu0 0
  %920 = vmatpush1.bf16.msra.mxu0 0
  %921 = vmatprep.subr.bf16.mxu0 0
  %922 = vmatpush1.bf16.msra.mxu0 0
  %923 = vmatprep.subr.bf16.mxu0 0
  %924 = vmatpush1.bf16.msra.mxu0 0
  %925 = vmatprep.subr.bf16.mxu0 0
  %926 = vmatpush1.bf16.msra.mxu0 0
  %927 = vmatprep.subr.bf16.mxu0 0
  %928 = vmatpush1.bf16.msra.mxu0 0
  %929 = vmatprep.mubr.bf16.mxu0 0
  %930 = vmatmul.mubr.bf16.gmra.mrb[0].mxu0 %v892
  %v931 = vpop.f32.mrb[0].mxu0
  %v932 = vadd.f32 0.0, %v931
  %v933 = vpop.f32.mrb[0].mxu0
  %v934 = vpop.f32.mrb[0].mxu0
  %v935 = vpop.f32.mrb[0].mxu0
  %936 = vdwg.mxu0
  %v937 = vadd.f32 %v872, %v932
  %s938 = scalar_lea.vmem %s0, 56
  %v939 = vld [vmem:[%s938] sm:$0xf]
  %s940 = scalar_lea.vmem %s1, 224
  %v941 = vld [vmem:[%s940] sm:$0xf]
  %v942 = vld [vmem:[%s940 + $0x4] sm:$0xf]
  %v943 = vld [vmem:[%s940 + $0x8] sm:$0xf]
  %v944 = vld [vmem:[%s940 + $0xc] sm:$0x1]
  %v949 = vunpack.c.l.b16 %v941
  %v950 = vunpack.c.l.b16 %v942
  %v951 = vunpack.c.l.b16 %v943
  %v952 = vunpack.c.l.b16 %v944
  %v953 = vpack.c.b16 %v950, %v949
  %v954 = vpack.c.b16 %v952, %v951
  %v957 = vsel %vm50, %v939, 0
  %v960 = vand.u32 %v954, %v57
  %962 = vmatprep.subr.bf16.mxu0 0
  %963 = vmatpush1.bf16.msra.mxu0 %v953
  %964 = vmatprep.subr.bf16.mxu0 0
  %965 = vmatpush1.bf16.msra.mxu0 %v960
  %966 = vmatprep.subr.bf16.mxu0 0
  %967 = vmatpush1.bf16.msra.mxu0 0
  %968 = vmatprep.subr.bf16.mxu0 0
  %969 = vmatpush1.bf16.msra.mxu0 0
  %970 = vmatprep.subr.bf16.mxu0 0
  %971 = vmatpush1.bf16.msra.mxu0 0
  %972 = vmatprep.subr.bf16.mxu0 0
  %973 = vmatpush1.bf16.msra.mxu0 0
  %974 = vmatprep.subr.bf16.mxu0 0
  %975 = vmatpush1.bf16.msra.mxu0 0
  %976 = vmatprep.subr.bf16.mxu0 0
  %977 = vmatpush1.bf16.msra.mxu0 0
  %978 = vmatprep.subr.bf16.mxu0 0
  %979 = vmatpush1.bf16.msra.mxu0 0
  %980 = vmatprep.subr.bf16.mxu0 0
  %981 = vmatpush1.bf16.msra.mxu0 0
  %982 = vmatprep.subr.bf16.mxu0 0
  %983 = vmatpush1.bf16.msra.mxu0 0
  %984 = vmatprep.subr.bf16.mxu0 0
  %985 = vmatpush1.bf16.msra.mxu0 0
  %986 = vmatprep.subr.bf16.mxu0 0
  %987 = vmatpush1.bf16.msra.mxu0 0
  %988 = vmatprep.subr.bf16.mxu0 0
  %989 = vmatpush1.bf16.msra.mxu0 0
  %990 = vmatprep.subr.bf16.mxu0 0
  %991 = vmatpush1.bf16.msra.mxu0 0
  %992 = vmatprep.subr.bf16.mxu0 0
  %993 = vmatpush1.bf16.msra.mxu0 0
  %994 = vmatprep.mubr.bf16.mxu0 0
  %995 = vmatmul.mubr.bf16.gmra.mrb[0].mxu0 %v957
  %v996 = vpop.f32.mrb[0].mxu0
  %v997 = vadd.f32 0.0, %v996
  %v998 = vpop.f32.mrb[0].mxu0
  %v999 = vpop.f32.mrb[0].mxu0
  %v1000 = vpop.f32.mrb[0].mxu0
  %1001 = vdwg.mxu0
  %v1002 = vadd.f32 %v937, %v997
  %s1003 = scalar_lea.vmem %s0, 60
  %v1004 = vld [vmem:[%s1003] sm:$0xf]
  %s1005 = scalar_lea.vmem %s1, 240
  %v1006 = vld [vmem:[%s1005] sm:$0xf]
  %v1007 = vld [vmem:[%s1005 + $0x4] sm:$0xf]
  %v1008 = vld [vmem:[%s1005 + $0x8] sm:$0xf]
  %v1009 = vld [vmem:[%s1005 + $0xc] sm:$0x1]
  %v1014 = vunpack.c.l.b16 %v1006
  %v1015 = vunpack.c.l.b16 %v1007
  %v1016 = vunpack.c.l.b16 %v1008
  %v1017 = vunpack.c.l.b16 %v1009
  %v1018 = vpack.c.b16 %v1015, %v1014
  %v1019 = vpack.c.b16 %v1017, %v1016
  %v1022 = vsel %vm50, %v1004, 0
  %v1025 = vand.u32 %v1019, %v57
  %1027 = vmatprep.subr.bf16.mxu0 0
  %1028 = vmatpush1.bf16.msra.mxu0 %v1018
  %1029 = vmatprep.subr.bf16.mxu0 0
  %1030 = vmatpush1.bf16.msra.mxu0 %v1025
  %1031 = vmatprep.subr.bf16.mxu0 0
  %1032 = vmatpush1.bf16.msra.mxu0 0
  %1033 = vmatprep.subr.bf16.mxu0 0
  %1034 = vmatpush1.bf16.msra.mxu0 0
  %1035 = vmatprep.subr.bf16.mxu0 0
  %1036 = vmatpush1.bf16.msra.mxu0 0
  %1037 = vmatprep.subr.bf16.mxu0 0
  %1038 = vmatpush1.bf16.msra.mxu0 0
  %1039 = vmatprep.subr.bf16.mxu0 0
  %1040 = vmatpush1.bf16.msra.mxu0 0
  %1041 = vmatprep.subr.bf16.mxu0 0
  %1042 = vmatpush1.bf16.msra.mxu0 0
  %1043 = vmatprep.subr.bf16.mxu0 0
  %1044 = vmatpush1.bf16.msra.mxu0 0
  %1045 = vmatprep.subr.bf16.mxu0 0
  %1046 = vmatpush1.bf16.msra.mxu0 0
  %1047 = vmatprep.subr.bf16.mxu0 0
  %1048 = vmatpush1.bf16.msra.mxu0 0
  %1049 = vmatprep.subr.bf16.mxu0 0
  %1050 = vmatpush1.bf16.msra.mxu0 0
  %1051 = vmatprep.subr.bf16.mxu0 0
  %1052 = vmatpush1.bf16.msra.mxu0 0
  %1053 = vmatprep.subr.bf16.mxu0 0
  %1054 = vmatpush1.bf16.msra.mxu0 0
  %1055 = vmatprep.subr.bf16.mxu0 0
  %1056 = vmatpush1.bf16.msra.mxu0 0
  %1057 = vmatprep.subr.bf16.mxu0 0
  %1058 = vmatpush1.bf16.msra.mxu0 0
  %1059 = vmatprep.mubr.bf16.mxu0 0
  %1060 = vmatmul.mubr.bf16.gmra.mrb[0].mxu0 %v1022
  %v1061 = vpop.f32.mrb[0].mxu0
  %v1062 = vadd.f32 0.0, %v1061
  %v1063 = vpop.f32.mrb[0].mxu0
  %v1064 = vpop.f32.mrb[0].mxu0
  %v1065 = vpop.f32.mrb[0].mxu0
  %1066 = vdwg.mxu0
  %v1067 = vadd.f32 %v1002, %v1062
  %v1068 = vld [vmem:[%s2] sm:$0x1]
  %v1070 = vlaneseq
  %v1071 = vshrl.u32 %v1070, 7
  %v1072 = vsub.s32 0, %v1071
  %v1073 = vrot.slane %v1068, %v1072
  %v1075 = vadd.f32 %v1067, %v1073
  %v1076 = vmax.f32 %v1075, 0.0
  %v1077 = vpack.c.bf16 %v1076, %v1076
  %v1078 = vld [vmem:[%s3] sm:$0xf]
  %v1079 = vld [vmem:[%s3 + $0x4] sm:$0xf]
  %v1080 = vld [vmem:[%s3 + $0x8] sm:$0xf]
  %v1081 = vld [vmem:[%s3 + $0xc] sm:$0xf]
  %v1082 = vld [vmem:[%s3 + $0x10] sm:$0xf]
  %v1083 = vld [vmem:[%s3 + $0x14] sm:$0xf]
  %v1084 = vld [vmem:[%s3 + $0x18] sm:$0xf]
  %v1085 = vld [vmem:[%s3 + $0x1c] sm:$0xf]
  %v1086 = vld [vmem:[%s3 + $0x20] sm:$0xf]
  %v1087 = vld [vmem:[%s3 + $0x24] sm:$0xf]
  %v1088 = vld [vmem:[%s3 + $0x28] sm:$0xf]
  %v1089 = vld [vmem:[%s3 + $0x2c] sm:$0xf]
  %v1090 = vld [vmem:[%s3 + $0x30] sm:$0xf]
  %v1091 = vld [vmem:[%s3 + $0x34] sm:$0xf]
  %v1092 = vld [vmem:[%s3 + $0x38] sm:$0xf]
  %v1093 = vld [vmem:[%s3 + $0x3c] sm:$0xf]
  %v1094 = vld [vmem:[%s4] sm:$0x1]
  %v1096 = vlaneseq
  %v1097 = vshrl.u32 %v1096, 7
  %v1098 = vsub.s32 0, %v1097
  %v1099 = vrot.slane %v1094, %v1098
  %v1117 = vunpack.c.l.b16 %v1078
  %v1118 = vunpack.c.l.b16 %v1079
  %v1119 = vunpack.c.l.b16 %v1080
  %v1120 = vunpack.c.l.b16 %v1081
  %v1121 = vunpack.c.l.b16 %v1082
  %v1122 = vunpack.c.l.b16 %v1083
  %v1123 = vunpack.c.l.b16 %v1084
  %v1124 = vunpack.c.l.b16 %v1085
  %v1125 = vunpack.c.l.b16 %v1086
  %v1126 = vunpack.c.l.b16 %v1087
  %v1127 = vunpack.c.l.b16 %v1088
  %v1128 = vunpack.c.l.b16 %v1089
  %v1129 = vunpack.c.l.b16 %v1090
  %v1130 = vunpack.c.l.b16 %v1091
  %v1131 = vunpack.c.l.b16 %v1092
  %v1132 = vunpack.c.l.b16 %v1093
  %v1133 = vpack.c.b16 %v1118, %v1117
  %v1134 = vpack.c.b16 %v1120, %v1119
  %v1135 = vpack.c.b16 %v1122, %v1121
  %v1136 = vpack.c.b16 %v1124, %v1123
  %v1137 = vpack.c.b16 %v1126, %v1125
  %v1138 = vpack.c.b16 %v1128, %v1127
  %v1139 = vpack.c.b16 %v1130, %v1129
  %v1140 = vpack.c.b16 %v1132, %v1131
  %1149 = vmatprep.subr.bf16.mxu0 0
  %1150 = vmatpush1.bf16.msra.mxu0 %v1133
  %1151 = vmatprep.subr.bf16.mxu0 0
  %1152 = vmatpush1.bf16.msra.mxu0 %v1134
  %1153 = vmatprep.subr.bf16.mxu0 0
  %1154 = vmatpush1.bf16.msra.mxu0 %v1135
  %1155 = vmatprep.subr.bf16.mxu0 0
  %1156 = vmatpush1.bf16.msra.mxu0 %v1136
  %1157 = vmatprep.subr.bf16.mxu0 0
  %1158 = vmatpush1.bf16.msra.mxu0 %v1137
  %1159 = vmatprep.subr.bf16.mxu0 0
  %1160 = vmatpush1.bf16.msra.mxu0 %v1138
  %1161 = vmatprep.subr.bf16.mxu0 0
  %1162 = vmatpush1.bf16.msra.mxu0 %v1139
  %1163 = vmatprep.subr.bf16.mxu0 0
  %1164 = vmatpush1.bf16.msra.mxu0 %v1140
  %1165 = vmatprep.subr.bf16.mxu0 0
  %1166 = vmatpush1.bf16.msra.mxu0 0
  %1167 = vmatprep.subr.bf16.mxu0 0
  %1168 = vmatpush1.bf16.msra.mxu0 0
  %1169 = vmatprep.subr.bf16.mxu0 0
  %1170 = vmatpush1.bf16.msra.mxu0 0
  %1171 = vmatprep.subr.bf16.mxu0 0
  %1172 = vmatpush1.bf16.msra.mxu0 0
  %1173 = vmatprep.subr.bf16.mxu0 0
  %1174 = vmatpush1.bf16.msra.mxu0 0
  %1175 = vmatprep.subr.bf16.mxu0 0
  %1176 = vmatpush1.bf16.msra.mxu0 0
  %1177 = vmatprep.subr.bf16.mxu0 0
  %1178 = vmatpush1.bf16.msra.mxu0 0
  %1179 = vmatprep.subr.bf16.mxu0 0
  %1180 = vmatpush1.bf16.msra.mxu0 0
  %1181 = vmatprep.mubr.bf16.mxu0 0
  %1182 = vmatmul.mubr.bf16.gmra.mrb[0].mxu0 %v1077
  %v1183 = vpop.f32.mrb[0].mxu0
  %v1184 = vadd.f32 %v1099, %v1183
  %v1185 = vpop.f32.mrb[0].mxu0
  %v1186 = vpop.f32.mrb[0].mxu0
  %v1187 = vpop.f32.mrb[0].mxu0
  %1188 = vdwg.mxu0
  %v1189 = vmax.f32 %v1184, 0.0
  %v1190 = vpack.c.bf16 %v1189, %v1189
  %v1191 = vld [vmem:[%s5] sm:$0xf]
  %v1192 = vld [vmem:[%s5 + $0x4] sm:$0xf]
  %v1193 = vld [vmem:[%s5 + $0x8] sm:$0xf]
  %v1194 = vld [vmem:[%s5 + $0xc] sm:$0xf]
  %v1195 = vld [vmem:[%s5 + $0x10] sm:$0xf]
  %v1196 = vld [vmem:[%s5 + $0x14] sm:$0xf]
  %v1197 = vld [vmem:[%s5 + $0x18] sm:$0xf]
  %v1198 = vld [vmem:[%s5 + $0x1c] sm:$0xf]
  %v1199 = vld [vmem:[%s5 + $0x20] sm:$0xf]
  %v1200 = vld [vmem:[%s5 + $0x24] sm:$0xf]
  %v1201 = vld [vmem:[%s5 + $0x28] sm:$0xf]
  %v1202 = vld [vmem:[%s5 + $0x2c] sm:$0xf]
  %v1203 = vld [vmem:[%s5 + $0x30] sm:$0xf]
  %v1204 = vld [vmem:[%s5 + $0x34] sm:$0xf]
  %v1205 = vld [vmem:[%s5 + $0x38] sm:$0xf]
  %v1206 = vld [vmem:[%s5 + $0x3c] sm:$0xf]
  %v1207 = vld [vmem:[%s6] sm:$0x1]
  %v1209 = vlaneseq
  %v1210 = vshrl.u32 %v1209, 7
  %v1211 = vsub.s32 0, %v1210
  %v1212 = vrot.slane %v1207, %v1211
  %v1230 = vunpack.c.l.b16 %v1191
  %v1231 = vunpack.c.l.b16 %v1192
  %v1232 = vunpack.c.l.b16 %v1193
  %v1233 = vunpack.c.l.b16 %v1194
  %v1234 = vunpack.c.l.b16 %v1195
  %v1235 = vunpack.c.l.b16 %v1196
  %v1236 = vunpack.c.l.b16 %v1197
  %v1237 = vunpack.c.l.b16 %v1198
  %v1238 = vunpack.c.l.b16 %v1199
  %v1239 = vunpack.c.l.b16 %v1200
  %v1240 = vunpack.c.l.b16 %v1201
  %v1241 = vunpack.c.l.b16 %v1202
  %v1242 = vunpack.c.l.b16 %v1203
  %v1243 = vunpack.c.l.b16 %v1204
  %v1244 = vunpack.c.l.b16 %v1205
  %v1245 = vunpack.c.l.b16 %v1206
  %v1246 = vpack.c.b16 %v1231, %v1230
  %v1247 = vpack.c.b16 %v1233, %v1232
  %v1248 = vpack.c.b16 %v1235, %v1234
  %v1249 = vpack.c.b16 %v1237, %v1236
  %v1250 = vpack.c.b16 %v1239, %v1238
  %v1251 = vpack.c.b16 %v1241, %v1240
  %v1252 = vpack.c.b16 %v1243, %v1242
  %v1253 = vpack.c.b16 %v1245, %v1244
  %1262 = vmatprep.subr.bf16.mxu0 0
  %1263 = vmatpush1.bf16.msra.mxu0 %v1246
  %1264 = vmatprep.subr.bf16.mxu0 0
  %1265 = vmatpush1.bf16.msra.mxu0 %v1247
  %1266 = vmatprep.subr.bf16.mxu0 0
  %1267 = vmatpush1.bf16.msra.mxu0 %v1248
  %1268 = vmatprep.subr.bf16.mxu0 0
  %1269 = vmatpush1.bf16.msra.mxu0 %v1249
  %1270 = vmatprep.subr.bf16.mxu0 0
  %1271 = vmatpush1.bf16.msra.mxu0 %v1250
  %1272 = vmatprep.subr.bf16.mxu0 0
  %1273 = vmatpush1.bf16.msra.mxu0 %v1251
  %1274 = vmatprep.subr.bf16.mxu0 0
  %1275 = vmatpush1.bf16.msra.mxu0 %v1252
  %1276 = vmatprep.subr.bf16.mxu0 0
  %1277 = vmatpush1.bf16.msra.mxu0 %v1253
  %1278 = vmatprep.subr.bf16.mxu0 0
  %1279 = vmatpush1.bf16.msra.mxu0 0
  %1280 = vmatprep.subr.bf16.mxu0 0
  %1281 = vmatpush1.bf16.msra.mxu0 0
  %1282 = vmatprep.subr.bf16.mxu0 0
  %1283 = vmatpush1.bf16.msra.mxu0 0
  %1284 = vmatprep.subr.bf16.mxu0 0
  %1285 = vmatpush1.bf16.msra.mxu0 0
  %1286 = vmatprep.subr.bf16.mxu0 0
  %1287 = vmatpush1.bf16.msra.mxu0 0
  %1288 = vmatprep.subr.bf16.mxu0 0
  %1289 = vmatpush1.bf16.msra.mxu0 0
  %1290 = vmatprep.subr.bf16.mxu0 0
  %1291 = vmatpush1.bf16.msra.mxu0 0
  %1292 = vmatprep.subr.bf16.mxu0 0
  %1293 = vmatpush1.bf16.msra.mxu0 0
  %1294 = vmatprep.mubr.bf16.mxu0 0
  %1295 = vmatmul.mubr.bf16.gmra.mrb[0].mxu0 %v1190
  %v1296 = vpop.f32.mrb[0].mxu0
  %v1297 = vadd.f32 %v1212, %v1296
  %v1298 = vpop.f32.mrb[0].mxu0
  %v1299 = vpop.f32.mrb[0].mxu0
  %v1300 = vpop.f32.mrb[0].mxu0
  %1301 = vdwg.mxu0
  %1302 = vst [vmem:[%s7] sm:$0xff] %v1297
  // Predicated region
  $region30: #{forward.5} parent=0 // pred_check
    _
  $region31: #{forward.5} parent=0 // pred_check_branch
    %1304 = sbr.rel (0) target = $region33
  $region32: #{forward.5} parent=0 // pred_region
    _
  $region33: #{forward.5} parent=0 // pred_fallthru
    _
  // Predicated region
  $region34: #{forward.5} parent=0 // pred_check
    _
  $region35: #{forward.5} parent=0 // pred_check_branch
    %1306 = sbr.rel (0) target = $region37
  $region36: #{forward.5} parent=0 // pred_region
    _
  $region37: #{forward.5} parent=0 // pred_fallthru
    _

</llo_original>
